<compile_context>
chip_gen: v5e
topology: v5e:2x2
jax: 0.10.0
libtpu: 0.0.40
codegen_flags: <defaults>
</compile_context>

<pallas_src>
import functools

import jax
import jax.numpy as jnp
from jax.experimental import pallas as pl
from jax.experimental.pallas import tpu as pltpu


# ---------------------------------------------------------------------------
# Fused forward kernel (single grid point; everything VMEM-resident).
# ---------------------------------------------------------------------------
def _fused_forward_kernel(src_ref, emb_ref, *refs, n_layers, hidden_dim, seq_len, b_pad):
    H = hidden_dim
    T = seq_len
    B = b_pad

    layer_refs = refs[: 3 * n_layers]
    fc1_w_ref, fc1_b_ref, fc2_w_ref, fc2_b_ref = refs[3 * n_layers : 3 * n_layers + 4]
    out_ref = refs[3 * n_layers + 4]
    h_scratch = refs[3 * n_layers + 5]  # (T*B, H) f32 VMEM scratch (inter-layer activations)

    vocab = emb_ref.shape[0]

    # ---- Embedding lookup fused as one-hot @ table (exact gather; f32, tiny at vocab=50) ----
    src = src_ref[...]  # (T*B, 1) int32
    vocab_iota = jax.lax.broadcasted_iota(jnp.int32, (T * B, vocab), 1)
    one_hot = (vocab_iota == src).astype(jnp.float32)  # (T*B, vocab)
    x = jnp.dot(one_hot, emb_ref[...], preferred_element_type=jnp.float32)  # (T*B, emb_dim)
    # TODO(synk): nn.Dropout after embedding omitted (eval/inference semantics).

    # Lane mask over the 4H gate axis: g-gate window (PyTorch gate order i, f, g, o).
    lane = jax.lax.broadcasted_iota(jnp.int32, (B, 4 * H), 1)
    g_mask = (lane >= 2 * H) & (lane < 3 * H)

    x_bf = x.astype(jnp.bfloat16)  # matmul operand for the first layer
    h = jnp.zeros((B, H), jnp.float32)
    for layer in range(n_layers):
        w_ih = layer_refs[3 * layer][...]      # (D_in, 4H) bf16, g-cols pre-scaled by 2
        w_hh = layer_refs[3 * layer + 1][...]  # (H, 4H)    bf16, g-cols pre-scaled by 2
        bias = layer_refs[3 * layer + 2][...]  # (1, 4H)    f32 = b_ih + b_hh, g pre-scaled by 2

        # Hoisted input projection for all timesteps, bias folded in once.
        pre = jnp.dot(x_bf, w_ih, preferred_element_type=jnp.float32) + bias  # (T*B, 4H) f32

        h = jnp.zeros((B, H), jnp.float32)
        c = jnp.zeros((B, H), jnp.float32)
        is_last_layer = layer + 1 == n_layers
        for t in range(T):  # fully unrolled recurrence (T small & static)
            gates = pre[t * B : (t + 1) * B, :] + jnp.dot(
                h.astype(jnp.bfloat16), w_hh, preferred_element_type=jnp.float32
            )  # (B, 4H) f32
            # Single sigmoid pass over the full tile; g-gate tanh recovered via
            # tanh(z) = 2*sigmoid(2z) - 1 (the 2z is pre-folded into the weights).
            s = jax.nn.sigmoid(gates)
            act = jnp.where(g_mask, 2.0 * s - 1.0, s)
            i_g = act[:, 0 * H : 1 * H]
            f_g = act[:, 1 * H : 2 * H]
            g_g = act[:, 2 * H : 3 * H]
            o_g = act[:, 3 * H : 4 * H]
            c = f_g * c + i_g * g_g
            h = o_g * jnp.tanh(c)
            if not is_last_layer:
                h_scratch[t * B : (t + 1) * B, :] = h

        if not is_last_layer:
            # TODO(synk): inter-layer dropout (train mode) omitted — eval semantics.
            x_bf = h_scratch[...].astype(jnp.bfloat16)  # (T*B, H) input to next layer

    # ---- Head on the last time step of the last layer: fc1 -> LeakyReLU -> fc2 ----
    z = (
        jnp.dot(h.astype(jnp.bfloat16), fc1_w_ref[...], preferred_element_type=jnp.float32)
        + fc1_b_ref[...]
    )
    z = jnp.where(z > 0, z, 0.01 * z)  # nn.LeakyReLU default negative_slope=0.01
    out = (
        jnp.dot(z.astype(jnp.bfloat16), fc2_w_ref[...], preferred_element_type=jnp.float32)
        + fc2_b_ref[...]
    )
    out_ref[...] = out.astype(out_ref.dtype)


# ---------------------------------------------------------------------------
# One-time parameter prep (outside jit): fold the tanh-via-sigmoid factor 2 into
# the g-gate columns and pre-cast matmul weights to bf16.
# ---------------------------------------------------------------------------
def prepare_params(params, n_layers):
    H = params["w_hh_l0"].shape[0]
    g_scale = jnp.concatenate(
        [jnp.ones((2 * H,)), jnp.full((H,), 2.0), jnp.ones((H,))]
    ).astype(jnp.float32)  # (4H,) : scale only the g-gate block

    prep = {"embedding": params["embedding"].astype(jnp.float32)}  # keep f32: exact gather
    for layer in range(n_layers):
        prep[f"w_ih_l{layer}"] = (params[f"w_ih_l{layer}"] * g_scale).astype(jnp.bfloat16)
        prep[f"w_hh_l{layer}"] = (params[f"w_hh_l{layer}"] * g_scale).astype(jnp.bfloat16)
        prep[f"b_l{layer}"] = (params[f"b_l{layer}"] * g_scale).astype(jnp.float32)
    prep["fc1_w"] = params["fc1_w"].astype(jnp.bfloat16)
    prep["fc1_b"] = params["fc1_b"].astype(jnp.float32)
    prep["fc2_w"] = params["fc2_w"].astype(jnp.bfloat16)
    prep["fc2_b"] = params["fc2_b"].astype(jnp.float32)
    return prep


# ---------------------------------------------------------------------------
# Wrapper: pad batch to a bf16 sublane multiple, run the single fused kernel, slice.
# ---------------------------------------------------------------------------
def lstm_model_forward(src, prepped, n_layers):
    T, B = src.shape
    H = prepped["w_hh_l0"].shape[0]
    O = prepped["fc2_w"].shape[1]

    # Pad batch to a multiple of 16 (bf16 sublane packing). Padded rows (token 0)
    # are computed independently and sliced off; LSTM has no cross-batch mixing.
    B_pad = ((B + 15) // 16) * 16
    src_p = src if B_pad == B else jnp.pad(src, ((0, 0), (0, B_pad - B)))
    src_flat = src_p.reshape(T * B_pad, 1).astype(jnp.int32)

    inputs = [src_flat, prepped["embedding"]]
    for layer in range(n_layers):
        inputs += [prepped[f"w_ih_l{layer}"], prepped[f"w_hh_l{layer}"], prepped[f"b_l{layer}"]]
    inputs += [prepped["fc1_w"], prepped["fc1_b"], prepped["fc2_w"], prepped["fc2_b"]]

    kernel = functools.partial(
        _fused_forward_kernel,
        n_layers=n_layers,
        hidden_dim=H,
        seq_len=T,
        b_pad=B_pad,
    )

    vmem = pltpu.MemorySpace.VMEM
    out_p = pl.pallas_call(
        kernel,
        out_shape=jax.ShapeDtypeStruct((B_pad, O), jnp.float32),
        in_specs=[pl.BlockSpec(memory_space=vmem)] * len(inputs),
        out_specs=pl.BlockSpec(memory_space=vmem),
        scratch_shapes=[pltpu.VMEM((T * B_pad, H), jnp.float32)],
        compiler_params=pltpu.CompilerParams(vmem_limit_bytes=32 * 1024 * 1024),
    )(*inputs)

    return out_p[:B]


# ---------------------------------------------------------------------------
# Parameter init (weights stored pre-transposed relative to PyTorch, f32 master copy).
# ---------------------------------------------------------------------------
def init_params(key, input_dim, output_dim, emb_dim, hidden_dim, n_layers):
    keys = jax.random.split(key, 4 + 3 * n_layers)
    params = {}
    params["embedding"] = jax.random.normal(keys[0], (input_dim, emb_dim), jnp.float32) * 0.1

    ki = 1
    for layer in range(n_layers):
        d_in = emb_dim if layer == 0 else hidden_dim
        # (in, 4H) and (H, 4H): pre-transposed vs PyTorch (4H, in)/(4H, H)
        params[f"w_ih_l{layer}"] = (
            jax.random.normal(keys[ki], (d_in, 4 * hidden_dim), jnp.float32) * 0.1
        )
        params[f"w_hh_l{layer}"] = (
            jax.random.normal(keys[ki + 1], (hidden_dim, 4 * hidden_dim), jnp.float32) * 0.1
        )
        # combined bias b_ih + b_hh, kept 2D (1, 4H) for TPU layout
        params[f"b_l{layer}"] = (
            jax.random.normal(keys[ki + 2], (1, 4 * hidden_dim), jnp.float32) * 0.1
        )
        ki += 3

    params["fc1_w"] = jax.random.normal(keys[ki], (hidden_dim, hidden_dim // 2), jnp.float32) * 0.1
    params["fc1_b"] = jnp.zeros((1, hidden_dim // 2), jnp.float32)
    params["fc2_w"] = (
        jax.random.normal(keys[ki + 1], (hidden_dim // 2, output_dim), jnp.float32) * 0.1
    )
    params["fc2_b"] = jnp.zeros((1, output_dim), jnp.float32)
    return params


if __name__ == "__main__":
    # Small shapes consistent with the module
    input_dim = 50      # vocab size
    output_dim = 8
    emb_dim = 16
    hidden_dim = 32
    n_layers = 2
    T, B = 8, 2         # seq_len, batch (nn.LSTM default: seq-first)

    key = jax.random.PRNGKey(0)
    pkey, skey = jax.random.split(key)
    params = init_params(pkey, input_dim, output_dim, emb_dim, hidden_dim, n_layers)
    prepped = prepare_params(params, n_layers)  # one-time: g-gate 2x fold + bf16 weight cast

    src = jax.random.randint(skey, (T, B), 0, input_dim, dtype=jnp.int32)

    forward = jax.jit(functools.partial(lstm_model_forward, n_layers=n_layers))
    out = forward(src, prepped)
    out = jax.block_until_ready(out)
    assert out.shape == (B, output_dim)
    print("KERNEL_OK")
</pallas_src>

<mosaic_0001>
module attributes {stable_mosaic.version = 11 : i64} {
  func.func @_fused_forward_kernel(%arg0: memref<128x1xi32, #tpu.memory_space<vmem>>, %arg1: memref<50x16xf32, #tpu.memory_space<vmem>>, %arg2: memref<16x128xbf16, #tpu.memory_space<vmem>>, %arg3: memref<32x128xbf16, #tpu.memory_space<vmem>>, %arg4: memref<1x128xf32, #tpu.memory_space<vmem>>, %arg5: memref<32x128xbf16, #tpu.memory_space<vmem>>, %arg6: memref<32x128xbf16, #tpu.memory_space<vmem>>, %arg7: memref<1x128xf32, #tpu.memory_space<vmem>>, %arg8: memref<32x16xbf16, #tpu.memory_space<vmem>>, %arg9: memref<1x16xf32, #tpu.memory_space<vmem>>, %arg10: memref<16x8xbf16, #tpu.memory_space<vmem>>, %arg11: memref<1x8xf32, #tpu.memory_space<vmem>>, %arg12: memref<16x8xf32, #tpu.memory_space<vmem>>, %arg13: memref<128x32xf32, #tpu.memory_space<vmem>>) attributes {dimension_semantics = [], scalar_prefetch = 0 : i64, scratch_operands = 1 : i64, tpu.core_type = #tpu.core_type<tc>} {
    %c0 = arith.constant 0 : index
    %c0_0 = arith.constant 0 : index
    %0 = vector.load %arg0[%c0, %c0_0] : memref<128x1xi32, #tpu.memory_space<vmem>>, vector<128x1xi32>
    %1 = tpu.iota {dimensions = array<i32: 1>} : vector<128x50xi32>
    %2 = vector.broadcast %0 : vector<128x1xi32> to vector<128x50xi32>
    %3 = arith.cmpi eq, %1, %2 : vector<128x50xi32>
    %4 = arith.extui %3 : vector<128x50xi1> to vector<128x50xi32>
    %5 = arith.sitofp %4 : vector<128x50xi32> to vector<128x50xf32>
    %c0_1 = arith.constant 0 : index
    %c0_2 = arith.constant 0 : index
    %6 = vector.load %arg1[%c0_1, %c0_2] : memref<50x16xf32, #tpu.memory_space<vmem>>, vector<50x16xf32>
    %cst = arith.constant dense<0.000000e+00> : vector<128x16xf32>
    %7 = tpu.matmul %5, %6, %cst {dimension_numbers = #tpu.dot_dimension_numbers<[1], [0], [0], [1], [0, 0, 1, 1], [], []>} : vector<128x50xf32>, vector<50x16xf32>, vector<128x16xf32> -> vector<128x16xf32>
    %8 = tpu.iota {dimensions = array<i32: 1>} : vector<16x128xi32>
    %c64_i32 = arith.constant 64 : i32
    %9 = vector.broadcast %c64_i32 : i32 to vector<16x128xi32>
    %10 = arith.cmpi sge, %8, %9 : vector<16x128xi32>
    %c96_i32 = arith.constant 96 : i32
    %11 = vector.broadcast %c96_i32 : i32 to vector<16x128xi32>
    %12 = arith.cmpi slt, %8, %11 : vector<16x128xi32>
    %13 = arith.andi %10, %12 : vector<16x128xi1>
    %14 = arith.truncf %7 : vector<128x16xf32> to vector<128x16xbf16>
    %c0_3 = arith.constant 0 : index
    %c0_4 = arith.constant 0 : index
    %15 = vector.load %arg2[%c0_3, %c0_4] : memref<16x128xbf16, #tpu.memory_space<vmem>>, vector<16x128xbf16>
    %c0_5 = arith.constant 0 : index
    %c0_6 = arith.constant 0 : index
    %16 = vector.load %arg3[%c0_5, %c0_6] : memref<32x128xbf16, #tpu.memory_space<vmem>>, vector<32x128xbf16>
    %c0_7 = arith.constant 0 : index
    %c0_8 = arith.constant 0 : index
    %17 = vector.load %arg4[%c0_7, %c0_8] : memref<1x128xf32, #tpu.memory_space<vmem>>, vector<1x128xf32>
    %cst_9 = arith.constant dense<0.000000e+00> : vector<128x128xf32>
    %18 = tpu.matmul %14, %15, %cst_9 {dimension_numbers = #tpu.dot_dimension_numbers<[1], [0], [0], [1], [0, 0, 1, 1], [], []>} : vector<128x16xbf16>, vector<16x128xbf16>, vector<128x128xf32> -> vector<128x128xf32>
    %19 = vector.broadcast %17 : vector<1x128xf32> to vector<128x128xf32>
    %20 = arith.addf %18, %19 : vector<128x128xf32>
    %cst_10 = arith.constant 0.000000e+00 : f32
    %21 = vector.broadcast %cst_10 : f32 to vector<16x32xf32>
    %cst_11 = arith.constant 0.000000e+00 : f32
    %22 = vector.broadcast %cst_11 : f32 to vector<16x32xf32>
    %23 = vector.extract_strided_slice %20 {offsets = [0, 0], sizes = [16, 128], strides = [1, 1]} : vector<128x128xf32> to vector<16x128xf32>
    %24 = arith.truncf %21 : vector<16x32xf32> to vector<16x32xbf16>
    %cst_12 = arith.constant dense<0.000000e+00> : vector<16x128xf32>
    %25 = tpu.matmul %24, %16, %cst_12 {dimension_numbers = #tpu.dot_dimension_numbers<[1], [0], [0], [1], [0, 0, 1, 1], [], []>} : vector<16x32xbf16>, vector<32x128xbf16>, vector<16x128xf32> -> vector<16x128xf32>
    %26 = arith.addf %23, %25 : vector<16x128xf32>
    %27 = arith.negf %26 : vector<16x128xf32>
    %28 = math.exp %27 : vector<16x128xf32>
    %cst_13 = arith.constant 1.000000e+00 : f32
    %29 = vector.broadcast %cst_13 : f32 to vector<16x128xf32>
    %30 = arith.addf %29, %28 : vector<16x128xf32>
    %31 = arith.divf %29, %30 : vector<16x128xf32>
    %cst_14 = arith.constant 2.000000e+00 : f32
    %32 = vector.broadcast %cst_14 : f32 to vector<16x128xf32>
    %33 = arith.mulf %32, %31 : vector<16x128xf32>
    %cst_15 = arith.constant 1.000000e+00 : f32
    %34 = vector.broadcast %cst_15 : f32 to vector<16x128xf32>
    %35 = arith.subf %33, %34 : vector<16x128xf32>
    %36 = arith.select %13, %35, %31 : vector<16x128xi1>, vector<16x128xf32>
    %37 = vector.extract_strided_slice %36 {offsets = [0, 0], sizes = [16, 32], strides = [1, 1]} : vector<16x128xf32> to vector<16x32xf32>
    %38 = vector.extract_strided_slice %36 {offsets = [0, 32], sizes = [16, 32], strides = [1, 1]} : vector<16x128xf32> to vector<16x32xf32>
    %39 = vector.extract_strided_slice %36 {offsets = [0, 64], sizes = [16, 32], strides = [1, 1]} : vector<16x128xf32> to vector<16x32xf32>
    %40 = vector.extract_strided_slice %36 {offsets = [0, 96], sizes = [16, 32], strides = [1, 1]} : vector<16x128xf32> to vector<16x32xf32>
    %41 = arith.mulf %38, %22 : vector<16x32xf32>
    %42 = arith.mulf %37, %39 : vector<16x32xf32>
    %43 = arith.addf %41, %42 : vector<16x32xf32>
    %44 = math.tanh %43 : vector<16x32xf32>
    %45 = arith.mulf %40, %44 : vector<16x32xf32>
    %c0_16 = arith.constant 0 : index
    %c0_17 = arith.constant 0 : index
    %46 = vector.load %arg13[%c0_16, %c0_17] : memref<128x32xf32, #tpu.memory_space<vmem>>, vector<16x32xf32>
    tpu.vector_store %arg13[%c0_16, %c0_17], %45 {strides = array<i32>} : memref<128x32xf32, #tpu.memory_space<vmem>>, vector<16x32xf32>,
    %47 = vector.extract_strided_slice %20 {offsets = [16, 0], sizes = [16, 128], strides = [1, 1]} : vector<128x128xf32> to vector<16x128xf32>
    %48 = arith.truncf %45 : vector<16x32xf32> to vector<16x32xbf16>
    %cst_18 = arith.constant dense<0.000000e+00> : vector<16x128xf32>
    %49 = tpu.matmul %48, %16, %cst_18 {dimension_numbers = #tpu.dot_dimension_numbers<[1], [0], [0], [1], [0, 0, 1, 1], [], []>} : vector<16x32xbf16>, vector<32x128xbf16>, vector<16x128xf32> -> vector<16x128xf32>
    %50 = arith.addf %47, %49 : vector<16x128xf32>
    %51 = arith.negf %50 : vector<16x128xf32>
    %52 = math.exp %51 : vector<16x128xf32>
    %cst_19 = arith.constant 1.000000e+00 : f32
    %53 = vector.broadcast %cst_19 : f32 to vector<16x128xf32>
    %54 = arith.addf %53, %52 : vector<16x128xf32>
    %55 = arith.divf %53, %54 : vector<16x128xf32>
    %cst_20 = arith.constant 2.000000e+00 : f32
    %56 = vector.broadcast %cst_20 : f32 to vector<16x128xf32>
    %57 = arith.mulf %56, %55 : vector<16x128xf32>
    %cst_21 = arith.constant 1.000000e+00 : f32
    %58 = vector.broadcast %cst_21 : f32 to vector<16x128xf32>
    %59 = arith.subf %57, %58 : vector<16x128xf32>
    %60 = arith.select %13, %59, %55 : vector<16x128xi1>, vector<16x128xf32>
    %61 = vector.extract_strided_slice %60 {offsets = [0, 0], sizes = [16, 32], strides = [1, 1]} : vector<16x128xf32> to vector<16x32xf32>
    %62 = vector.extract_strided_slice %60 {offsets = [0, 32], sizes = [16, 32], strides = [1, 1]} : vector<16x128xf32> to vector<16x32xf32>
    %63 = vector.extract_strided_slice %60 {offsets = [0, 64], sizes = [16, 32], strides = [1, 1]} : vector<16x128xf32> to vector<16x32xf32>
    %64 = vector.extract_strided_slice %60 {offsets = [0, 96], sizes = [16, 32], strides = [1, 1]} : vector<16x128xf32> to vector<16x32xf32>
    %65 = arith.mulf %62, %43 : vector<16x32xf32>
    %66 = arith.mulf %61, %63 : vector<16x32xf32>
    %67 = arith.addf %65, %66 : vector<16x32xf32>
    %68 = math.tanh %67 : vector<16x32xf32>
    %69 = arith.mulf %64, %68 : vector<16x32xf32>
    %c16 = arith.constant 16 : index
    %c0_22 = arith.constant 0 : index
    %70 = vector.load %arg13[%c16, %c0_22] : memref<128x32xf32, #tpu.memory_space<vmem>>, vector<16x32xf32>
    tpu.vector_store %arg13[%c16, %c0_22], %69 {strides = array<i32>} : memref<128x32xf32, #tpu.memory_space<vmem>>, vector<16x32xf32>,
    %71 = vector.extract_strided_slice %20 {offsets = [32, 0], sizes = [16, 128], strides = [1, 1]} : vector<128x128xf32> to vector<16x128xf32>
    %72 = arith.truncf %69 : vector<16x32xf32> to vector<16x32xbf16>
    %cst_23 = arith.constant dense<0.000000e+00> : vector<16x128xf32>
    %73 = tpu.matmul %72, %16, %cst_23 {dimension_numbers = #tpu.dot_dimension_numbers<[1], [0], [0], [1], [0, 0, 1, 1], [], []>} : vector<16x32xbf16>, vector<32x128xbf16>, vector<16x128xf32> -> vector<16x128xf32>
    %74 = arith.addf %71, %73 : vector<16x128xf32>
    %75 = arith.negf %74 : vector<16x128xf32>
    %76 = math.exp %75 : vector<16x128xf32>
    %cst_24 = arith.constant 1.000000e+00 : f32
    %77 = vector.broadcast %cst_24 : f32 to vector<16x128xf32>
    %78 = arith.addf %77, %76 : vector<16x128xf32>
    %79 = arith.divf %77, %78 : vector<16x128xf32>
    %cst_25 = arith.constant 2.000000e+00 : f32
    %80 = vector.broadcast %cst_25 : f32 to vector<16x128xf32>
    %81 = arith.mulf %80, %79 : vector<16x128xf32>
    %cst_26 = arith.constant 1.000000e+00 : f32
    %82 = vector.broadcast %cst_26 : f32 to vector<16x128xf32>
    %83 = arith.subf %81, %82 : vector<16x128xf32>
    %84 = arith.select %13, %83, %79 : vector<16x128xi1>, vector<16x128xf32>
    %85 = vector.extract_strided_slice %84 {offsets = [0, 0], sizes = [16, 32], strides = [1, 1]} : vector<16x128xf32> to vector<16x32xf32>
    %86 = vector.extract_strided_slice %84 {offsets = [0, 32], sizes = [16, 32], strides = [1, 1]} : vector<16x128xf32> to vector<16x32xf32>
    %87 = vector.extract_strided_slice %84 {offsets = [0, 64], sizes = [16, 32], strides = [1, 1]} : vector<16x128xf32> to vector<16x32xf32>
    %88 = vector.extract_strided_slice %84 {offsets = [0, 96], sizes = [16, 32], strides = [1, 1]} : vector<16x128xf32> to vector<16x32xf32>
    %89 = arith.mulf %86, %67 : vector<16x32xf32>
    %90 = arith.mulf %85, %87 : vector<16x32xf32>
    %91 = arith.addf %89, %90 : vector<16x32xf32>
    %92 = math.tanh %91 : vector<16x32xf32>
    %93 = arith.mulf %88, %92 : vector<16x32xf32>
    %c32 = arith.constant 32 : index
    %c0_27 = arith.constant 0 : index
    %94 = vector.load %arg13[%c32, %c0_27] : memref<128x32xf32, #tpu.memory_space<vmem>>, vector<16x32xf32>
    tpu.vector_store %arg13[%c32, %c0_27], %93 {strides = array<i32>} : memref<128x32xf32, #tpu.memory_space<vmem>>, vector<16x32xf32>,
    %95 = vector.extract_strided_slice %20 {offsets = [48, 0], sizes = [16, 128], strides = [1, 1]} : vector<128x128xf32> to vector<16x128xf32>
    %96 = arith.truncf %93 : vector<16x32xf32> to vector<16x32xbf16>
    %cst_28 = arith.constant dense<0.000000e+00> : vector<16x128xf32>
    %97 = tpu.matmul %96, %16, %cst_28 {dimension_numbers = #tpu.dot_dimension_numbers<[1], [0], [0], [1], [0, 0, 1, 1], [], []>} : vector<16x32xbf16>, vector<32x128xbf16>, vector<16x128xf32> -> vector<16x128xf32>
    %98 = arith.addf %95, %97 : vector<16x128xf32>
    %99 = arith.negf %98 : vector<16x128xf32>
    %100 = math.exp %99 : vector<16x128xf32>
    %cst_29 = arith.constant 1.000000e+00 : f32
    %101 = vector.broadcast %cst_29 : f32 to vector<16x128xf32>
    %102 = arith.addf %101, %100 : vector<16x128xf32>
    %103 = arith.divf %101, %102 : vector<16x128xf32>
    %cst_30 = arith.constant 2.000000e+00 : f32
    %104 = vector.broadcast %cst_30 : f32 to vector<16x128xf32>
    %105 = arith.mulf %104, %103 : vector<16x128xf32>
    %cst_31 = arith.constant 1.000000e+00 : f32
    %106 = vector.broadcast %cst_31 : f32 to vector<16x128xf32>
    %107 = arith.subf %105, %106 : vector<16x128xf32>
    %108 = arith.select %13, %107, %103 : vector<16x128xi1>, vector<16x128xf32>
    %109 = vector.extract_strided_slice %108 {offsets = [0, 0], sizes = [16, 32], strides = [1, 1]} : vector<16x128xf32> to vector<16x32xf32>
    %110 = vector.extract_strided_slice %108 {offsets = [0, 32], sizes = [16, 32], strides = [1, 1]} : vector<16x128xf32> to vector<16x32xf32>
    %111 = vector.extract_strided_slice %108 {offsets = [0, 64], sizes = [16, 32], strides = [1, 1]} : vector<16x128xf32> to vector<16x32xf32>
    %112 = vector.extract_strided_slice %108 {offsets = [0, 96], sizes = [16, 32], strides = [1, 1]} : vector<16x128xf32> to vector<16x32xf32>
    %113 = arith.mulf %110, %91 : vector<16x32xf32>
    %114 = arith.mulf %109, %111 : vector<16x32xf32>
    %115 = arith.addf %113, %114 : vector<16x32xf32>
    %116 = math.tanh %115 : vector<16x32xf32>
    %117 = arith.mulf %112, %116 : vector<16x32xf32>
    %c48 = arith.constant 48 : index
    %c0_32 = arith.constant 0 : index
    %118 = vector.load %arg13[%c48, %c0_32] : memref<128x32xf32, #tpu.memory_space<vmem>>, vector<16x32xf32>
    tpu.vector_store %arg13[%c48, %c0_32], %117 {strides = array<i32>} : memref<128x32xf32, #tpu.memory_space<vmem>>, vector<16x32xf32>,
    %119 = vector.extract_strided_slice %20 {offsets = [64, 0], sizes = [16, 128], strides = [1, 1]} : vector<128x128xf32> to vector<16x128xf32>
    %120 = arith.truncf %117 : vector<16x32xf32> to vector<16x32xbf16>
    %cst_33 = arith.constant dense<0.000000e+00> : vector<16x128xf32>
    %121 = tpu.matmul %120, %16, %cst_33 {dimension_numbers = #tpu.dot_dimension_numbers<[1], [0], [0], [1], [0, 0, 1, 1], [], []>} : vector<16x32xbf16>, vector<32x128xbf16>, vector<16x128xf32> -> vector<16x128xf32>
    %122 = arith.addf %119, %121 : vector<16x128xf32>
    %123 = arith.negf %122 : vector<16x128xf32>
    %124 = math.exp %123 : vector<16x128xf32>
    %cst_34 = arith.constant 1.000000e+00 : f32
    %125 = vector.broadcast %cst_34 : f32 to vector<16x128xf32>
    %126 = arith.addf %125, %124 : vector<16x128xf32>
    %127 = arith.divf %125, %126 : vector<16x128xf32>
    %cst_35 = arith.constant 2.000000e+00 : f32
    %128 = vector.broadcast %cst_35 : f32 to vector<16x128xf32>
    %129 = arith.mulf %128, %127 : vector<16x128xf32>
    %cst_36 = arith.constant 1.000000e+00 : f32
    %130 = vector.broadcast %cst_36 : f32 to vector<16x128xf32>
    %131 = arith.subf %129, %130 : vector<16x128xf32>
    %132 = arith.select %13, %131, %127 : vector<16x128xi1>, vector<16x128xf32>
    %133 = vector.extract_strided_slice %132 {offsets = [0, 0], sizes = [16, 32], strides = [1, 1]} : vector<16x128xf32> to vector<16x32xf32>
    %134 = vector.extract_strided_slice %132 {offsets = [0, 32], sizes = [16, 32], strides = [1, 1]} : vector<16x128xf32> to vector<16x32xf32>
    %135 = vector.extract_strided_slice %132 {offsets = [0, 64], sizes = [16, 32], strides = [1, 1]} : vector<16x128xf32> to vector<16x32xf32>
    %136 = vector.extract_strided_slice %132 {offsets = [0, 96], sizes = [16, 32], strides = [1, 1]} : vector<16x128xf32> to vector<16x32xf32>
    %137 = arith.mulf %134, %115 : vector<16x32xf32>
    %138 = arith.mulf %133, %135 : vector<16x32xf32>
    %139 = arith.addf %137, %138 : vector<16x32xf32>
    %140 = math.tanh %139 : vector<16x32xf32>
    %141 = arith.mulf %136, %140 : vector<16x32xf32>
    %c64 = arith.constant 64 : index
    %c0_37 = arith.constant 0 : index
    %142 = vector.load %arg13[%c64, %c0_37] : memref<128x32xf32, #tpu.memory_space<vmem>>, vector<16x32xf32>
    tpu.vector_store %arg13[%c64, %c0_37], %141 {strides = array<i32>} : memref<128x32xf32, #tpu.memory_space<vmem>>, vector<16x32xf32>,
    %143 = vector.extract_strided_slice %20 {offsets = [80, 0], sizes = [16, 128], strides = [1, 1]} : vector<128x128xf32> to vector<16x128xf32>
    %144 = arith.truncf %141 : vector<16x32xf32> to vector<16x32xbf16>
    %cst_38 = arith.constant dense<0.000000e+00> : vector<16x128xf32>
    %145 = tpu.matmul %144, %16, %cst_38 {dimension_numbers = #tpu.dot_dimension_numbers<[1], [0], [0], [1], [0, 0, 1, 1], [], []>} : vector<16x32xbf16>, vector<32x128xbf16>, vector<16x128xf32> -> vector<16x128xf32>
    %146 = arith.addf %143, %145 : vector<16x128xf32>
    %147 = arith.negf %146 : vector<16x128xf32>
    %148 = math.exp %147 : vector<16x128xf32>
    %cst_39 = arith.constant 1.000000e+00 : f32
    %149 = vector.broadcast %cst_39 : f32 to vector<16x128xf32>
    %150 = arith.addf %149, %148 : vector<16x128xf32>
    %151 = arith.divf %149, %150 : vector<16x128xf32>
    %cst_40 = arith.constant 2.000000e+00 : f32
    %152 = vector.broadcast %cst_40 : f32 to vector<16x128xf32>
    %153 = arith.mulf %152, %151 : vector<16x128xf32>
    %cst_41 = arith.constant 1.000000e+00 : f32
    %154 = vector.broadcast %cst_41 : f32 to vector<16x128xf32>
    %155 = arith.subf %153, %154 : vector<16x128xf32>
    %156 = arith.select %13, %155, %151 : vector<16x128xi1>, vector<16x128xf32>
    %157 = vector.extract_strided_slice %156 {offsets = [0, 0], sizes = [16, 32], strides = [1, 1]} : vector<16x128xf32> to vector<16x32xf32>
    %158 = vector.extract_strided_slice %156 {offsets = [0, 32], sizes = [16, 32], strides = [1, 1]} : vector<16x128xf32> to vector<16x32xf32>
    %159 = vector.extract_strided_slice %156 {offsets = [0, 64], sizes = [16, 32], strides = [1, 1]} : vector<16x128xf32> to vector<16x32xf32>
    %160 = vector.extract_strided_slice %156 {offsets = [0, 96], sizes = [16, 32], strides = [1, 1]} : vector<16x128xf32> to vector<16x32xf32>
    %161 = arith.mulf %158, %139 : vector<16x32xf32>
    %162 = arith.mulf %157, %159 : vector<16x32xf32>
    %163 = arith.addf %161, %162 : vector<16x32xf32>
    %164 = math.tanh %163 : vector<16x32xf32>
    %165 = arith.mulf %160, %164 : vector<16x32xf32>
    %c80 = arith.constant 80 : index
    %c0_42 = arith.constant 0 : index
    %166 = vector.load %arg13[%c80, %c0_42] : memref<128x32xf32, #tpu.memory_space<vmem>>, vector<16x32xf32>
    tpu.vector_store %arg13[%c80, %c0_42], %165 {strides = array<i32>} : memref<128x32xf32, #tpu.memory_space<vmem>>, vector<16x32xf32>,
    %167 = vector.extract_strided_slice %20 {offsets = [96, 0], sizes = [16, 128], strides = [1, 1]} : vector<128x128xf32> to vector<16x128xf32>
    %168 = arith.truncf %165 : vector<16x32xf32> to vector<16x32xbf16>
    %cst_43 = arith.constant dense<0.000000e+00> : vector<16x128xf32>
    %169 = tpu.matmul %168, %16, %cst_43 {dimension_numbers = #tpu.dot_dimension_numbers<[1], [0], [0], [1], [0, 0, 1, 1], [], []>} : vector<16x32xbf16>, vector<32x128xbf16>, vector<16x128xf32> -> vector<16x128xf32>
    %170 = arith.addf %167, %169 : vector<16x128xf32>
    %171 = arith.negf %170 : vector<16x128xf32>
    %172 = math.exp %171 : vector<16x128xf32>
    %cst_44 = arith.constant 1.000000e+00 : f32
    %173 = vector.broadcast %cst_44 : f32 to vector<16x128xf32>
    %174 = arith.addf %173, %172 : vector<16x128xf32>
    %175 = arith.divf %173, %174 : vector<16x128xf32>
    %cst_45 = arith.constant 2.000000e+00 : f32
    %176 = vector.broadcast %cst_45 : f32 to vector<16x128xf32>
    %177 = arith.mulf %176, %175 : vector<16x128xf32>
    %cst_46 = arith.constant 1.000000e+00 : f32
    %178 = vector.broadcast %cst_46 : f32 to vector<16x128xf32>
    %179 = arith.subf %177, %178 : vector<16x128xf32>
    %180 = arith.select %13, %179, %175 : vector<16x128xi1>, vector<16x128xf32>
    %181 = vector.extract_strided_slice %180 {offsets = [0, 0], sizes = [16, 32], strides = [1, 1]} : vector<16x128xf32> to vector<16x32xf32>
    %182 = vector.extract_strided_slice %180 {offsets = [0, 32], sizes = [16, 32], strides = [1, 1]} : vector<16x128xf32> to vector<16x32xf32>
    %183 = vector.extract_strided_slice %180 {offsets = [0, 64], sizes = [16, 32], strides = [1, 1]} : vector<16x128xf32> to vector<16x32xf32>
    %184 = vector.extract_strided_slice %180 {offsets = [0, 96], sizes = [16, 32], strides = [1, 1]} : vector<16x128xf32> to vector<16x32xf32>
    %185 = arith.mulf %182, %163 : vector<16x32xf32>
    %186 = arith.mulf %181, %183 : vector<16x32xf32>
    %187 = arith.addf %185, %186 : vector<16x32xf32>
    %188 = math.tanh %187 : vector<16x32xf32>
    %189 = arith.mulf %184, %188 : vector<16x32xf32>
    %c96 = arith.constant 96 : index
    %c0_47 = arith.constant 0 : index
    %190 = vector.load %arg13[%c96, %c0_47] : memref<128x32xf32, #tpu.memory_space<vmem>>, vector<16x32xf32>
    tpu.vector_store %arg13[%c96, %c0_47], %189 {strides = array<i32>} : memref<128x32xf32, #tpu.memory_space<vmem>>, vector<16x32xf32>,
    %191 = vector.extract_strided_slice %20 {offsets = [112, 0], sizes = [16, 128], strides = [1, 1]} : vector<128x128xf32> to vector<16x128xf32>
    %192 = arith.truncf %189 : vector<16x32xf32> to vector<16x32xbf16>
    %cst_48 = arith.constant dense<0.000000e+00> : vector<16x128xf32>
    %193 = tpu.matmul %192, %16, %cst_48 {dimension_numbers = #tpu.dot_dimension_numbers<[1], [0], [0], [1], [0, 0, 1, 1], [], []>} : vector<16x32xbf16>, vector<32x128xbf16>, vector<16x128xf32> -> vector<16x128xf32>
    %194 = arith.addf %191, %193 : vector<16x128xf32>
    %195 = arith.negf %194 : vector<16x128xf32>
    %196 = math.exp %195 : vector<16x128xf32>
    %cst_49 = arith.constant 1.000000e+00 : f32
    %197 = vector.broadcast %cst_49 : f32 to vector<16x128xf32>
    %198 = arith.addf %197, %196 : vector<16x128xf32>
    %199 = arith.divf %197, %198 : vector<16x128xf32>
    %cst_50 = arith.constant 2.000000e+00 : f32
    %200 = vector.broadcast %cst_50 : f32 to vector<16x128xf32>
    %201 = arith.mulf %200, %199 : vector<16x128xf32>
    %cst_51 = arith.constant 1.000000e+00 : f32
    %202 = vector.broadcast %cst_51 : f32 to vector<16x128xf32>
    %203 = arith.subf %201, %202 : vector<16x128xf32>
    %204 = arith.select %13, %203, %199 : vector<16x128xi1>, vector<16x128xf32>
    %205 = vector.extract_strided_slice %204 {offsets = [0, 0], sizes = [16, 32], strides = [1, 1]} : vector<16x128xf32> to vector<16x32xf32>
    %206 = vector.extract_strided_slice %204 {offsets = [0, 32], sizes = [16, 32], strides = [1, 1]} : vector<16x128xf32> to vector<16x32xf32>
    %207 = vector.extract_strided_slice %204 {offsets = [0, 64], sizes = [16, 32], strides = [1, 1]} : vector<16x128xf32> to vector<16x32xf32>
    %208 = vector.extract_strided_slice %204 {offsets = [0, 96], sizes = [16, 32], strides = [1, 1]} : vector<16x128xf32> to vector<16x32xf32>
    %209 = arith.mulf %206, %187 : vector<16x32xf32>
    %210 = arith.mulf %205, %207 : vector<16x32xf32>
    %211 = arith.addf %209, %210 : vector<16x32xf32>
    %212 = math.tanh %211 : vector<16x32xf32>
    %213 = arith.mulf %208, %212 : vector<16x32xf32>
    %c112 = arith.constant 112 : index
    %c0_52 = arith.constant 0 : index
    %214 = vector.load %arg13[%c112, %c0_52] : memref<128x32xf32, #tpu.memory_space<vmem>>, vector<16x32xf32>
    tpu.vector_store %arg13[%c112, %c0_52], %213 {strides = array<i32>} : memref<128x32xf32, #tpu.memory_space<vmem>>, vector<16x32xf32>,
    %c0_53 = arith.constant 0 : index
    %c0_54 = arith.constant 0 : index
    %215 = vector.load %arg13[%c0_53, %c0_54] : memref<128x32xf32, #tpu.memory_space<vmem>>, vector<128x32xf32>
    %216 = arith.truncf %215 : vector<128x32xf32> to vector<128x32xbf16>
    %c0_55 = arith.constant 0 : index
    %c0_56 = arith.constant 0 : index
    %217 = vector.load %arg5[%c0_55, %c0_56] : memref<32x128xbf16, #tpu.memory_space<vmem>>, vector<32x128xbf16>
    %c0_57 = arith.constant 0 : index
    %c0_58 = arith.constant 0 : index
    %218 = vector.load %arg6[%c0_57, %c0_58] : memref<32x128xbf16, #tpu.memory_space<vmem>>, vector<32x128xbf16>
    %c0_59 = arith.constant 0 : index
    %c0_60 = arith.constant 0 : index
    %219 = vector.load %arg7[%c0_59, %c0_60] : memref<1x128xf32, #tpu.memory_space<vmem>>, vector<1x128xf32>
    %cst_61 = arith.constant dense<0.000000e+00> : vector<128x128xf32>
    %220 = tpu.matmul %216, %217, %cst_61 {dimension_numbers = #tpu.dot_dimension_numbers<[1], [0], [0], [1], [0, 0, 1, 1], [], []>} : vector<128x32xbf16>, vector<32x128xbf16>, vector<128x128xf32> -> vector<128x128xf32>
    %221 = vector.broadcast %219 : vector<1x128xf32> to vector<128x128xf32>
    %222 = arith.addf %220, %221 : vector<128x128xf32>
    %cst_62 = arith.constant 0.000000e+00 : f32
    %223 = vector.broadcast %cst_62 : f32 to vector<16x32xf32>
    %cst_63 = arith.constant 0.000000e+00 : f32
    %224 = vector.broadcast %cst_63 : f32 to vector<16x32xf32>
    %225 = vector.extract_strided_slice %222 {offsets = [0, 0], sizes = [16, 128], strides = [1, 1]} : vector<128x128xf32> to vector<16x128xf32>
    %226 = arith.truncf %223 : vector<16x32xf32> to vector<16x32xbf16>
    %cst_64 = arith.constant dense<0.000000e+00> : vector<16x128xf32>
    %227 = tpu.matmul %226, %218, %cst_64 {dimension_numbers = #tpu.dot_dimension_numbers<[1], [0], [0], [1], [0, 0, 1, 1], [], []>} : vector<16x32xbf16>, vector<32x128xbf16>, vector<16x128xf32> -> vector<16x128xf32>
    %228 = arith.addf %225, %227 : vector<16x128xf32>
    %229 = arith.negf %228 : vector<16x128xf32>
    %230 = math.exp %229 : vector<16x128xf32>
    %cst_65 = arith.constant 1.000000e+00 : f32
    %231 = vector.broadcast %cst_65 : f32 to vector<16x128xf32>
    %232 = arith.addf %231, %230 : vector<16x128xf32>
    %233 = arith.divf %231, %232 : vector<16x128xf32>
    %cst_66 = arith.constant 2.000000e+00 : f32
    %234 = vector.broadcast %cst_66 : f32 to vector<16x128xf32>
    %235 = arith.mulf %234, %233 : vector<16x128xf32>
    %cst_67 = arith.constant 1.000000e+00 : f32
    %236 = vector.broadcast %cst_67 : f32 to vector<16x128xf32>
    %237 = arith.subf %235, %236 : vector<16x128xf32>
    %238 = arith.select %13, %237, %233 : vector<16x128xi1>, vector<16x128xf32>
    %239 = vector.extract_strided_slice %238 {offsets = [0, 0], sizes = [16, 32], strides = [1, 1]} : vector<16x128xf32> to vector<16x32xf32>
    %240 = vector.extract_strided_slice %238 {offsets = [0, 32], sizes = [16, 32], strides = [1, 1]} : vector<16x128xf32> to vector<16x32xf32>
    %241 = vector.extract_strided_slice %238 {offsets = [0, 64], sizes = [16, 32], strides = [1, 1]} : vector<16x128xf32> to vector<16x32xf32>
    %242 = vector.extract_strided_slice %238 {offsets = [0, 96], sizes = [16, 32], strides = [1, 1]} : vector<16x128xf32> to vector<16x32xf32>
    %243 = arith.mulf %240, %224 : vector<16x32xf32>
    %244 = arith.mulf %239, %241 : vector<16x32xf32>
    %245 = arith.addf %243, %244 : vector<16x32xf32>
    %246 = math.tanh %245 : vector<16x32xf32>
    %247 = arith.mulf %242, %246 : vector<16x32xf32>
    %248 = vector.extract_strided_slice %222 {offsets = [16, 0], sizes = [16, 128], strides = [1, 1]} : vector<128x128xf32> to vector<16x128xf32>
    %249 = arith.truncf %247 : vector<16x32xf32> to vector<16x32xbf16>
    %cst_68 = arith.constant dense<0.000000e+00> : vector<16x128xf32>
    %250 = tpu.matmul %249, %218, %cst_68 {dimension_numbers = #tpu.dot_dimension_numbers<[1], [0], [0], [1], [0, 0, 1, 1], [], []>} : vector<16x32xbf16>, vector<32x128xbf16>, vector<16x128xf32> -> vector<16x128xf32>
    %251 = arith.addf %248, %250 : vector<16x128xf32>
    %252 = arith.negf %251 : vector<16x128xf32>
    %253 = math.exp %252 : vector<16x128xf32>
    %cst_69 = arith.constant 1.000000e+00 : f32
    %254 = vector.broadcast %cst_69 : f32 to vector<16x128xf32>
    %255 = arith.addf %254, %253 : vector<16x128xf32>
    %256 = arith.divf %254, %255 : vector<16x128xf32>
    %cst_70 = arith.constant 2.000000e+00 : f32
    %257 = vector.broadcast %cst_70 : f32 to vector<16x128xf32>
    %258 = arith.mulf %257, %256 : vector<16x128xf32>
    %cst_71 = arith.constant 1.000000e+00 : f32
    %259 = vector.broadcast %cst_71 : f32 to vector<16x128xf32>
    %260 = arith.subf %258, %259 : vector<16x128xf32>
    %261 = arith.select %13, %260, %256 : vector<16x128xi1>, vector<16x128xf32>
    %262 = vector.extract_strided_slice %261 {offsets = [0, 0], sizes = [16, 32], strides = [1, 1]} : vector<16x128xf32> to vector<16x32xf32>
    %263 = vector.extract_strided_slice %261 {offsets = [0, 32], sizes = [16, 32], strides = [1, 1]} : vector<16x128xf32> to vector<16x32xf32>
    %264 = vector.extract_strided_slice %261 {offsets = [0, 64], sizes = [16, 32], strides = [1, 1]} : vector<16x128xf32> to vector<16x32xf32>
    %265 = vector.extract_strided_slice %261 {offsets = [0, 96], sizes = [16, 32], strides = [1, 1]} : vector<16x128xf32> to vector<16x32xf32>
    %266 = arith.mulf %263, %245 : vector<16x32xf32>
    %267 = arith.mulf %262, %264 : vector<16x32xf32>
    %268 = arith.addf %266, %267 : vector<16x32xf32>
    %269 = math.tanh %268 : vector<16x32xf32>
    %270 = arith.mulf %265, %269 : vector<16x32xf32>
    %271 = vector.extract_strided_slice %222 {offsets = [32, 0], sizes = [16, 128], strides = [1, 1]} : vector<128x128xf32> to vector<16x128xf32>
    %272 = arith.truncf %270 : vector<16x32xf32> to vector<16x32xbf16>
    %cst_72 = arith.constant dense<0.000000e+00> : vector<16x128xf32>
    %273 = tpu.matmul %272, %218, %cst_72 {dimension_numbers = #tpu.dot_dimension_numbers<[1], [0], [0], [1], [0, 0, 1, 1], [], []>} : vector<16x32xbf16>, vector<32x128xbf16>, vector<16x128xf32> -> vector<16x128xf32>
    %274 = arith.addf %271, %273 : vector<16x128xf32>
    %275 = arith.negf %274 : vector<16x128xf32>
    %276 = math.exp %275 : vector<16x128xf32>
    %cst_73 = arith.constant 1.000000e+00 : f32
    %277 = vector.broadcast %cst_73 : f32 to vector<16x128xf32>
    %278 = arith.addf %277, %276 : vector<16x128xf32>
    %279 = arith.divf %277, %278 : vector<16x128xf32>
    %cst_74 = arith.constant 2.000000e+00 : f32
    %280 = vector.broadcast %cst_74 : f32 to vector<16x128xf32>
    %281 = arith.mulf %280, %279 : vector<16x128xf32>
    %cst_75 = arith.constant 1.000000e+00 : f32
    %282 = vector.broadcast %cst_75 : f32 to vector<16x128xf32>
    %283 = arith.subf %281, %282 : vector<16x128xf32>
    %284 = arith.select %13, %283, %279 : vector<16x128xi1>, vector<16x128xf32>
    %285 = vector.extract_strided_slice %284 {offsets = [0, 0], sizes = [16, 32], strides = [1, 1]} : vector<16x128xf32> to vector<16x32xf32>
    %286 = vector.extract_strided_slice %284 {offsets = [0, 32], sizes = [16, 32], strides = [1, 1]} : vector<16x128xf32> to vector<16x32xf32>
    %287 = vector.extract_strided_slice %284 {offsets = [0, 64], sizes = [16, 32], strides = [1, 1]} : vector<16x128xf32> to vector<16x32xf32>
    %288 = vector.extract_strided_slice %284 {offsets = [0, 96], sizes = [16, 32], strides = [1, 1]} : vector<16x128xf32> to vector<16x32xf32>
    %289 = arith.mulf %286, %268 : vector<16x32xf32>
    %290 = arith.mulf %285, %287 : vector<16x32xf32>
    %291 = arith.addf %289, %290 : vector<16x32xf32>
    %292 = math.tanh %291 : vector<16x32xf32>
    %293 = arith.mulf %288, %292 : vector<16x32xf32>
    %294 = vector.extract_strided_slice %222 {offsets = [48, 0], sizes = [16, 128], strides = [1, 1]} : vector<128x128xf32> to vector<16x128xf32>
    %295 = arith.truncf %293 : vector<16x32xf32> to vector<16x32xbf16>
    %cst_76 = arith.constant dense<0.000000e+00> : vector<16x128xf32>
    %296 = tpu.matmul %295, %218, %cst_76 {dimension_numbers = #tpu.dot_dimension_numbers<[1], [0], [0], [1], [0, 0, 1, 1], [], []>} : vector<16x32xbf16>, vector<32x128xbf16>, vector<16x128xf32> -> vector<16x128xf32>
    %297 = arith.addf %294, %296 : vector<16x128xf32>
    %298 = arith.negf %297 : vector<16x128xf32>
    %299 = math.exp %298 : vector<16x128xf32>
    %cst_77 = arith.constant 1.000000e+00 : f32
    %300 = vector.broadcast %cst_77 : f32 to vector<16x128xf32>
    %301 = arith.addf %300, %299 : vector<16x128xf32>
    %302 = arith.divf %300, %301 : vector<16x128xf32>
    %cst_78 = arith.constant 2.000000e+00 : f32
    %303 = vector.broadcast %cst_78 : f32 to vector<16x128xf32>
    %304 = arith.mulf %303, %302 : vector<16x128xf32>
    %cst_79 = arith.constant 1.000000e+00 : f32
    %305 = vector.broadcast %cst_79 : f32 to vector<16x128xf32>
    %306 = arith.subf %304, %305 : vector<16x128xf32>
    %307 = arith.select %13, %306, %302 : vector<16x128xi1>, vector<16x128xf32>
    %308 = vector.extract_strided_slice %307 {offsets = [0, 0], sizes = [16, 32], strides = [1, 1]} : vector<16x128xf32> to vector<16x32xf32>
    %309 = vector.extract_strided_slice %307 {offsets = [0, 32], sizes = [16, 32], strides = [1, 1]} : vector<16x128xf32> to vector<16x32xf32>
    %310 = vector.extract_strided_slice %307 {offsets = [0, 64], sizes = [16, 32], strides = [1, 1]} : vector<16x128xf32> to vector<16x32xf32>
    %311 = vector.extract_strided_slice %307 {offsets = [0, 96], sizes = [16, 32], strides = [1, 1]} : vector<16x128xf32> to vector<16x32xf32>
    %312 = arith.mulf %309, %291 : vector<16x32xf32>
    %313 = arith.mulf %308, %310 : vector<16x32xf32>
    %314 = arith.addf %312, %313 : vector<16x32xf32>
    %315 = math.tanh %314 : vector<16x32xf32>
    %316 = arith.mulf %311, %315 : vector<16x32xf32>
    %317 = vector.extract_strided_slice %222 {offsets = [64, 0], sizes = [16, 128], strides = [1, 1]} : vector<128x128xf32> to vector<16x128xf32>
    %318 = arith.truncf %316 : vector<16x32xf32> to vector<16x32xbf16>
    %cst_80 = arith.constant dense<0.000000e+00> : vector<16x128xf32>
    %319 = tpu.matmul %318, %218, %cst_80 {dimension_numbers = #tpu.dot_dimension_numbers<[1], [0], [0], [1], [0, 0, 1, 1], [], []>} : vector<16x32xbf16>, vector<32x128xbf16>, vector<16x128xf32> -> vector<16x128xf32>
    %320 = arith.addf %317, %319 : vector<16x128xf32>
    %321 = arith.negf %320 : vector<16x128xf32>
    %322 = math.exp %321 : vector<16x128xf32>
    %cst_81 = arith.constant 1.000000e+00 : f32
    %323 = vector.broadcast %cst_81 : f32 to vector<16x128xf32>
    %324 = arith.addf %323, %322 : vector<16x128xf32>
    %325 = arith.divf %323, %324 : vector<16x128xf32>
    %cst_82 = arith.constant 2.000000e+00 : f32
    %326 = vector.broadcast %cst_82 : f32 to vector<16x128xf32>
    %327 = arith.mulf %326, %325 : vector<16x128xf32>
    %cst_83 = arith.constant 1.000000e+00 : f32
    %328 = vector.broadcast %cst_83 : f32 to vector<16x128xf32>
    %329 = arith.subf %327, %328 : vector<16x128xf32>
    %330 = arith.select %13, %329, %325 : vector<16x128xi1>, vector<16x128xf32>
    %331 = vector.extract_strided_slice %330 {offsets = [0, 0], sizes = [16, 32], strides = [1, 1]} : vector<16x128xf32> to vector<16x32xf32>
    %332 = vector.extract_strided_slice %330 {offsets = [0, 32], sizes = [16, 32], strides = [1, 1]} : vector<16x128xf32> to vector<16x32xf32>
    %333 = vector.extract_strided_slice %330 {offsets = [0, 64], sizes = [16, 32], strides = [1, 1]} : vector<16x128xf32> to vector<16x32xf32>
    %334 = vector.extract_strided_slice %330 {offsets = [0, 96], sizes = [16, 32], strides = [1, 1]} : vector<16x128xf32> to vector<16x32xf32>
    %335 = arith.mulf %332, %314 : vector<16x32xf32>
    %336 = arith.mulf %331, %333 : vector<16x32xf32>
    %337 = arith.addf %335, %336 : vector<16x32xf32>
    %338 = math.tanh %337 : vector<16x32xf32>
    %339 = arith.mulf %334, %338 : vector<16x32xf32>
    %340 = vector.extract_strided_slice %222 {offsets = [80, 0], sizes = [16, 128], strides = [1, 1]} : vector<128x128xf32> to vector<16x128xf32>
    %341 = arith.truncf %339 : vector<16x32xf32> to vector<16x32xbf16>
    %cst_84 = arith.constant dense<0.000000e+00> : vector<16x128xf32>
    %342 = tpu.matmul %341, %218, %cst_84 {dimension_numbers = #tpu.dot_dimension_numbers<[1], [0], [0], [1], [0, 0, 1, 1], [], []>} : vector<16x32xbf16>, vector<32x128xbf16>, vector<16x128xf32> -> vector<16x128xf32>
    %343 = arith.addf %340, %342 : vector<16x128xf32>
    %344 = arith.negf %343 : vector<16x128xf32>
    %345 = math.exp %344 : vector<16x128xf32>
    %cst_85 = arith.constant 1.000000e+00 : f32
    %346 = vector.broadcast %cst_85 : f32 to vector<16x128xf32>
    %347 = arith.addf %346, %345 : vector<16x128xf32>
    %348 = arith.divf %346, %347 : vector<16x128xf32>
    %cst_86 = arith.constant 2.000000e+00 : f32
    %349 = vector.broadcast %cst_86 : f32 to vector<16x128xf32>
    %350 = arith.mulf %349, %348 : vector<16x128xf32>
    %cst_87 = arith.constant 1.000000e+00 : f32
    %351 = vector.broadcast %cst_87 : f32 to vector<16x128xf32>
    %352 = arith.subf %350, %351 : vector<16x128xf32>
    %353 = arith.select %13, %352, %348 : vector<16x128xi1>, vector<16x128xf32>
    %354 = vector.extract_strided_slice %353 {offsets = [0, 0], sizes = [16, 32], strides = [1, 1]} : vector<16x128xf32> to vector<16x32xf32>
    %355 = vector.extract_strided_slice %353 {offsets = [0, 32], sizes = [16, 32], strides = [1, 1]} : vector<16x128xf32> to vector<16x32xf32>
    %356 = vector.extract_strided_slice %353 {offsets = [0, 64], sizes = [16, 32], strides = [1, 1]} : vector<16x128xf32> to vector<16x32xf32>
    %357 = vector.extract_strided_slice %353 {offsets = [0, 96], sizes = [16, 32], strides = [1, 1]} : vector<16x128xf32> to vector<16x32xf32>
    %358 = arith.mulf %355, %337 : vector<16x32xf32>
    %359 = arith.mulf %354, %356 : vector<16x32xf32>
    %360 = arith.addf %358, %359 : vector<16x32xf32>
    %361 = math.tanh %360 : vector<16x32xf32>
    %362 = arith.mulf %357, %361 : vector<16x32xf32>
    %363 = vector.extract_strided_slice %222 {offsets = [96, 0], sizes = [16, 128], strides = [1, 1]} : vector<128x128xf32> to vector<16x128xf32>
    %364 = arith.truncf %362 : vector<16x32xf32> to vector<16x32xbf16>
    %cst_88 = arith.constant dense<0.000000e+00> : vector<16x128xf32>
    %365 = tpu.matmul %364, %218, %cst_88 {dimension_numbers = #tpu.dot_dimension_numbers<[1], [0], [0], [1], [0, 0, 1, 1], [], []>} : vector<16x32xbf16>, vector<32x128xbf16>, vector<16x128xf32> -> vector<16x128xf32>
    %366 = arith.addf %363, %365 : vector<16x128xf32>
    %367 = arith.negf %366 : vector<16x128xf32>
    %368 = math.exp %367 : vector<16x128xf32>
    %cst_89 = arith.constant 1.000000e+00 : f32
    %369 = vector.broadcast %cst_89 : f32 to vector<16x128xf32>
    %370 = arith.addf %369, %368 : vector<16x128xf32>
    %371 = arith.divf %369, %370 : vector<16x128xf32>
    %cst_90 = arith.constant 2.000000e+00 : f32
    %372 = vector.broadcast %cst_90 : f32 to vector<16x128xf32>
    %373 = arith.mulf %372, %371 : vector<16x128xf32>
    %cst_91 = arith.constant 1.000000e+00 : f32
    %374 = vector.broadcast %cst_91 : f32 to vector<16x128xf32>
    %375 = arith.subf %373, %374 : vector<16x128xf32>
    %376 = arith.select %13, %375, %371 : vector<16x128xi1>, vector<16x128xf32>
    %377 = vector.extract_strided_slice %376 {offsets = [0, 0], sizes = [16, 32], strides = [1, 1]} : vector<16x128xf32> to vector<16x32xf32>
    %378 = vector.extract_strided_slice %376 {offsets = [0, 32], sizes = [16, 32], strides = [1, 1]} : vector<16x128xf32> to vector<16x32xf32>
    %379 = vector.extract_strided_slice %376 {offsets = [0, 64], sizes = [16, 32], strides = [1, 1]} : vector<16x128xf32> to vector<16x32xf32>
    %380 = vector.extract_strided_slice %376 {offsets = [0, 96], sizes = [16, 32], strides = [1, 1]} : vector<16x128xf32> to vector<16x32xf32>
    %381 = arith.mulf %378, %360 : vector<16x32xf32>
    %382 = arith.mulf %377, %379 : vector<16x32xf32>
    %383 = arith.addf %381, %382 : vector<16x32xf32>
    %384 = math.tanh %383 : vector<16x32xf32>
    %385 = arith.mulf %380, %384 : vector<16x32xf32>
    %386 = vector.extract_strided_slice %222 {offsets = [112, 0], sizes = [16, 128], strides = [1, 1]} : vector<128x128xf32> to vector<16x128xf32>
    %387 = arith.truncf %385 : vector<16x32xf32> to vector<16x32xbf16>
    %cst_92 = arith.constant dense<0.000000e+00> : vector<16x128xf32>
    %388 = tpu.matmul %387, %218, %cst_92 {dimension_numbers = #tpu.dot_dimension_numbers<[1], [0], [0], [1], [0, 0, 1, 1], [], []>} : vector<16x32xbf16>, vector<32x128xbf16>, vector<16x128xf32> -> vector<16x128xf32>
    %389 = arith.addf %386, %388 : vector<16x128xf32>
    %390 = arith.negf %389 : vector<16x128xf32>
    %391 = math.exp %390 : vector<16x128xf32>
    %cst_93 = arith.constant 1.000000e+00 : f32
    %392 = vector.broadcast %cst_93 : f32 to vector<16x128xf32>
    %393 = arith.addf %392, %391 : vector<16x128xf32>
    %394 = arith.divf %392, %393 : vector<16x128xf32>
    %cst_94 = arith.constant 2.000000e+00 : f32
    %395 = vector.broadcast %cst_94 : f32 to vector<16x128xf32>
    %396 = arith.mulf %395, %394 : vector<16x128xf32>
    %cst_95 = arith.constant 1.000000e+00 : f32
    %397 = vector.broadcast %cst_95 : f32 to vector<16x128xf32>
    %398 = arith.subf %396, %397 : vector<16x128xf32>
    %399 = arith.select %13, %398, %394 : vector<16x128xi1>, vector<16x128xf32>
    %400 = vector.extract_strided_slice %399 {offsets = [0, 0], sizes = [16, 32], strides = [1, 1]} : vector<16x128xf32> to vector<16x32xf32>
    %401 = vector.extract_strided_slice %399 {offsets = [0, 32], sizes = [16, 32], strides = [1, 1]} : vector<16x128xf32> to vector<16x32xf32>
    %402 = vector.extract_strided_slice %399 {offsets = [0, 64], sizes = [16, 32], strides = [1, 1]} : vector<16x128xf32> to vector<16x32xf32>
    %403 = vector.extract_strided_slice %399 {offsets = [0, 96], sizes = [16, 32], strides = [1, 1]} : vector<16x128xf32> to vector<16x32xf32>
    %404 = arith.mulf %401, %383 : vector<16x32xf32>
    %405 = arith.mulf %400, %402 : vector<16x32xf32>
    %406 = arith.addf %404, %405 : vector<16x32xf32>
    %407 = math.tanh %406 : vector<16x32xf32>
    %408 = arith.mulf %403, %407 : vector<16x32xf32>
    %409 = arith.truncf %408 : vector<16x32xf32> to vector<16x32xbf16>
    %c0_96 = arith.constant 0 : index
    %c0_97 = arith.constant 0 : index
    %410 = vector.load %arg8[%c0_96, %c0_97] : memref<32x16xbf16, #tpu.memory_space<vmem>>, vector<32x16xbf16>
    %cst_98 = arith.constant dense<0.000000e+00> : vector<16x16xf32>
    %411 = tpu.matmul %409, %410, %cst_98 {dimension_numbers = #tpu.dot_dimension_numbers<[1], [0], [0], [1], [0, 0, 1, 1], [], []>} : vector<16x32xbf16>, vector<32x16xbf16>, vector<16x16xf32> -> vector<16x16xf32>
    %c0_99 = arith.constant 0 : index
    %c0_100 = arith.constant 0 : index
    %412 = vector.load %arg9[%c0_99, %c0_100] : memref<1x16xf32, #tpu.memory_space<vmem>>, vector<1x16xf32>
    %413 = vector.broadcast %412 : vector<1x16xf32> to vector<16x16xf32>
    %414 = arith.addf %411, %413 : vector<16x16xf32>
    %cst_101 = arith.constant 0.000000e+00 : f32
    %415 = vector.broadcast %cst_101 : f32 to vector<16x16xf32>
    %416 = arith.cmpf ogt, %414, %415 : vector<16x16xf32>
    %cst_102 = arith.constant 0.00999999977 : f32
    %417 = vector.broadcast %cst_102 : f32 to vector<16x16xf32>
    %418 = arith.mulf %417, %414 : vector<16x16xf32>
    %419 = arith.select %416, %414, %418 : vector<16x16xi1>, vector<16x16xf32>
    %420 = arith.truncf %419 : vector<16x16xf32> to vector<16x16xbf16>
    %c0_103 = arith.constant 0 : index
    %c0_104 = arith.constant 0 : index
    %421 = vector.load %arg10[%c0_103, %c0_104] : memref<16x8xbf16, #tpu.memory_space<vmem>>, vector<16x8xbf16>
    %cst_105 = arith.constant dense<0.000000e+00> : vector<16x8xf32>
    %422 = tpu.matmul %420, %421, %cst_105 {dimension_numbers = #tpu.dot_dimension_numbers<[1], [0], [0], [1], [0, 0, 1, 1], [], []>} : vector<16x16xbf16>, vector<16x8xbf16>, vector<16x8xf32> -> vector<16x8xf32>
    %c0_106 = arith.constant 0 : index
    %c0_107 = arith.constant 0 : index
    %423 = vector.load %arg11[%c0_106, %c0_107] : memref<1x8xf32, #tpu.memory_space<vmem>>, vector<1x8xf32>
    %424 = vector.broadcast %423 : vector<1x8xf32> to vector<16x8xf32>
    %425 = arith.addf %422, %424 : vector<16x8xf32>
    %c0_108 = arith.constant 0 : index
    %c0_109 = arith.constant 0 : index
    %426 = vector.load %arg12[%c0_108, %c0_109] : memref<16x8xf32, #tpu.memory_space<vmem>>, vector<16x8xf32>
    tpu.vector_store %arg12[%c0_108, %c0_109], %425 {strides = array<i32>} : memref<16x8xf32, #tpu.memory_space<vmem>>, vector<16x8xf32>,
    return
  }
}

</mosaic_0001>

<llo_original>
// kernel: lstm_model_forward.1
$region0: #{lstm_model_forward.1}
  #allocation0 [shape = 'u32[]', space=smem, size = 0x4, offset = 0x4, fixed_abs, tag = 'smem constant byte address 0x4 - core index']
  #allocation1 [shape = 'u32[72,128]{1,0:T(1,128)}', space=vmem, size = 0x9000, scoped, tag = 'internal scratch']
  #allocation2 [shape = 'f32[128,32]{1,0:T(8,128)}', space=vmem, size = 0x10000, scoped, tag = 'scratch operand']
  %s0 = inlined_call_operand.vmem [shape: s32[128,1], index: 0, kind: input, shape index: {}]
  %s1 = inlined_call_operand.vmem [shape: f32[50,16], index: 1, kind: input, shape index: {}]
  %s2 = inlined_call_operand.vmem [shape: bf16[16,128], index: 2, kind: input, shape index: {}]
  %s3 = inlined_call_operand.vmem [shape: bf16[32,128], index: 3, kind: input, shape index: {}]
  %s4 = inlined_call_operand.vmem [shape: f32[1,128], index: 4, kind: input, shape index: {}]
  %s5 = inlined_call_operand.vmem [shape: bf16[32,128], index: 5, kind: input, shape index: {}]
  %s6 = inlined_call_operand.vmem [shape: bf16[32,128], index: 6, kind: input, shape index: {}]
  %s7 = inlined_call_operand.vmem [shape: f32[1,128], index: 7, kind: input, shape index: {}]
  %s8 = inlined_call_operand.vmem [shape: bf16[32,16], index: 8, kind: input, shape index: {}]
  %s9 = inlined_call_operand.vmem [shape: f32[1,16], index: 9, kind: input, shape index: {}]
  %s10 = inlined_call_operand.vmem [shape: bf16[16,8], index: 10, kind: input, shape index: {}]
  %s11 = inlined_call_operand.vmem [shape: f32[1,8], index: 11, kind: input, shape index: {}]
  %s12 = inlined_call_operand.vmem [shape: f32[16,8], index: 12, kind: output, shape index: {}]
  %s13 = sld [smem:[#allocation0]]
  $region58: #{lstm_model_forward.1} parent=0
    _
  %s15 = ssub.s32 1, %s13
  %s16 = scalar_select 0, %s15, %s13
  // Predicated region
  $region2: #{lstm_model_forward.1} parent=0 // pred_check
    _
  $region3: #{lstm_model_forward.1} parent=0 // pred_check_branch
    %18 = sbr.rel (0) target = $region5
  $region4: #{lstm_model_forward.1} parent=0 // pred_region
    _
  $region5: #{lstm_model_forward.1} parent=0 // pred_fallthru
    _
  // Predicated region
  $region6: #{lstm_model_forward.1} parent=0 // pred_check
    _
  $region7: #{lstm_model_forward.1} parent=0 // pred_check_branch
    %20 = sbr.rel (0) target = $region9
  $region8: #{lstm_model_forward.1} parent=0 // pred_region
    _
  $region9: #{lstm_model_forward.1} parent=0 // pred_fallthru
    _
  // Predicated region
  $region10: #{lstm_model_forward.1} parent=0 // pred_check
    _
  $region11: #{lstm_model_forward.1} parent=0 // pred_check_branch
    %22 = sbr.rel (0) target = $region13
  $region12: #{lstm_model_forward.1} parent=0 // pred_region
    _
  $region13: #{lstm_model_forward.1} parent=0 // pred_fallthru
    _
  // Predicated region
  $region14: #{lstm_model_forward.1} parent=0 // pred_check
    _
  $region15: #{lstm_model_forward.1} parent=0 // pred_check_branch
    %24 = sbr.rel (0) target = $region17
  $region16: #{lstm_model_forward.1} parent=0 // pred_region
    _
  $region17: #{lstm_model_forward.1} parent=0 // pred_fallthru
    _
  // Predicated region
  $region18: #{lstm_model_forward.1} parent=0 // pred_check
    _
  $region19: #{lstm_model_forward.1} parent=0 // pred_check_branch
    %26 = sbr.rel (0) target = $region21
  $region20: #{lstm_model_forward.1} parent=0 // pred_region
    _
  $region21: #{lstm_model_forward.1} parent=0 // pred_fallthru
    _
  // Predicated region
  $region22: #{lstm_model_forward.1} parent=0 // pred_check
    _
  $region23: #{lstm_model_forward.1} parent=0 // pred_check_branch
    %28 = sbr.rel (0) target = $region25
  $region24: #{lstm_model_forward.1} parent=0 // pred_region
    _
  $region25: #{lstm_model_forward.1} parent=0 // pred_fallthru
    _
  // Predicated region
  $region26: #{lstm_model_forward.1} parent=0 // pred_check
    _
  $region27: #{lstm_model_forward.1} parent=0 // pred_check_branch
    %30 = sbr.rel (0) target = $region29
  $region28: #{lstm_model_forward.1} parent=0 // pred_region
    _
  $region29: #{lstm_model_forward.1} parent=0 // pred_fallthru
    _
  // Predicated region
  $region30: #{lstm_model_forward.1} parent=0 // pred_check
    _
  $region31: #{lstm_model_forward.1} parent=0 // pred_check_branch
    %32 = sbr.rel (0) target = $region33
  $region32: #{lstm_model_forward.1} parent=0 // pred_region
    _
  $region33: #{lstm_model_forward.1} parent=0 // pred_fallthru
    _
  // Predicated region
  $region34: #{lstm_model_forward.1} parent=0 // pred_check
    _
  $region35: #{lstm_model_forward.1} parent=0 // pred_check_branch
    %34 = sbr.rel (0) target = $region37
  $region36: #{lstm_model_forward.1} parent=0 // pred_region
    _
  $region37: #{lstm_model_forward.1} parent=0 // pred_fallthru
    _
  // Predicated region
  $region38: #{lstm_model_forward.1} parent=0 // pred_check
    _
  $region39: #{lstm_model_forward.1} parent=0 // pred_check_branch
    %36 = sbr.rel (0) target = $region41
  $region40: #{lstm_model_forward.1} parent=0 // pred_region
    _
  $region41: #{lstm_model_forward.1} parent=0 // pred_fallthru
    _
  // Predicated region
  $region42: #{lstm_model_forward.1} parent=0 // pred_check
    _
  $region43: #{lstm_model_forward.1} parent=0 // pred_check_branch
    %38 = sbr.rel (0) target = $region45
  $region44: #{lstm_model_forward.1} parent=0 // pred_region
    _
  $region45: #{lstm_model_forward.1} parent=0 // pred_fallthru
    _
  // Predicated region
  $region46: #{lstm_model_forward.1} parent=0 // pred_check
    _
  $region47: #{lstm_model_forward.1} parent=0 // pred_check_branch
    %40 = sbr.rel (0) target = $region49
  $region48: #{lstm_model_forward.1} parent=0 // pred_region
    _
  $region49: #{lstm_model_forward.1} parent=0 // pred_fallthru
    _
  %v42 = vld [vmem:[%s0] sm:$0xff]
  %v43 = vld [vmem:[%s0 + $0x8] sm:$0xff]
  %v44 = vld [vmem:[%s0 + $0x10] sm:$0xff]
  %v45 = vld [vmem:[%s0 + $0x18] sm:$0xff]
  %v46 = vld [vmem:[%s0 + $0x20] sm:$0xff]
  %v47 = vld [vmem:[%s0 + $0x28] sm:$0xff]
  %v48 = vld [vmem:[%s0 + $0x30] sm:$0xff]
  %v49 = vld [vmem:[%s0 + $0x38] sm:$0xff]
  %v50 = vld [vmem:[%s0 + $0x40] sm:$0xff]
  %v51 = vld [vmem:[%s0 + $0x48] sm:$0xff]
  %v52 = vld [vmem:[%s0 + $0x50] sm:$0xff]
  %v53 = vld [vmem:[%s0 + $0x58] sm:$0xff]
  %v54 = vld [vmem:[%s0 + $0x60] sm:$0xff]
  %v55 = vld [vmem:[%s0 + $0x68] sm:$0xff]
  %v56 = vld [vmem:[%s0 + $0x70] sm:$0xff]
  %v57 = vld [vmem:[%s0 + $0x78] sm:$0xff]
  %v58 = vlaneseq
  %v59 = vand.u32 %v58, 127
  %60 = vset.pattern.permute.xlu0 0
  %61 = vperm.xlu0 %60, %v42
  %v62 = vpop.permute.xlu0 %61
  %63 = vset.pattern.permute.xlu0 0
  %64 = vperm.xlu0 %63, %v43
  %v65 = vpop.permute.xlu0 %64
  %66 = vset.pattern.permute.xlu0 0
  %67 = vperm.xlu0 %66, %v44
  %v68 = vpop.permute.xlu0 %67
  %69 = vset.pattern.permute.xlu0 0
  %70 = vperm.xlu0 %69, %v45
  %v71 = vpop.permute.xlu0 %70
  %72 = vset.pattern.permute.xlu0 0
  %73 = vperm.xlu0 %72, %v46
  %v74 = vpop.permute.xlu0 %73
  %75 = vset.pattern.permute.xlu0 0
  %76 = vperm.xlu0 %75, %v47
  %v77 = vpop.permute.xlu0 %76
  %78 = vset.pattern.permute.xlu0 0
  %79 = vperm.xlu0 %78, %v48
  %v80 = vpop.permute.xlu0 %79
  %81 = vset.pattern.permute.xlu0 0
  %82 = vperm.xlu0 %81, %v49
  %v83 = vpop.permute.xlu0 %82
  %84 = vset.pattern.permute.xlu0 0
  %85 = vperm.xlu0 %84, %v50
  %v86 = vpop.permute.xlu0 %85
  %87 = vset.pattern.permute.xlu0 0
  %88 = vperm.xlu0 %87, %v51
  %v89 = vpop.permute.xlu0 %88
  %90 = vset.pattern.permute.xlu0 0
  %91 = vperm.xlu0 %90, %v52
  %v92 = vpop.permute.xlu0 %91
  %93 = vset.pattern.permute.xlu0 0
  %94 = vperm.xlu0 %93, %v53
  %v95 = vpop.permute.xlu0 %94
  %96 = vset.pattern.permute.xlu0 0
  %97 = vperm.xlu0 %96, %v54
  %v98 = vpop.permute.xlu0 %97
  %99 = vset.pattern.permute.xlu0 0
  %100 = vperm.xlu0 %99, %v55
  %v101 = vpop.permute.xlu0 %100
  %102 = vset.pattern.permute.xlu0 0
  %103 = vperm.xlu0 %102, %v56
  %v104 = vpop.permute.xlu0 %103
  %105 = vset.pattern.permute.xlu0 0
  %106 = vperm.xlu0 %105, %v57
  %v107 = vpop.permute.xlu0 %106
  %vm108 = vcmp.eq.s32.totalorder %v59, %v62
  %vm109 = vcmp.eq.s32.totalorder %v59, %v65
  %vm110 = vcmp.eq.s32.totalorder %v59, %v68
  %vm111 = vcmp.eq.s32.totalorder %v59, %v71
  %vm112 = vcmp.eq.s32.totalorder %v59, %v74
  %vm113 = vcmp.eq.s32.totalorder %v59, %v77
  %vm114 = vcmp.eq.s32.totalorder %v59, %v80
  %vm115 = vcmp.eq.s32.totalorder %v59, %v83
  %vm116 = vcmp.eq.s32.totalorder %v59, %v86
  %vm117 = vcmp.eq.s32.totalorder %v59, %v89
  %vm118 = vcmp.eq.s32.totalorder %v59, %v92
  %vm119 = vcmp.eq.s32.totalorder %v59, %v95
  %vm120 = vcmp.eq.s32.totalorder %v59, %v98
  %vm121 = vcmp.eq.s32.totalorder %v59, %v101
  %vm122 = vcmp.eq.s32.totalorder %v59, %v104
  %vm123 = vcmp.eq.s32.totalorder %v59, %v107
  %v124 = vsel %vm108, 1, 0
  %v125 = vsel %vm109, 1, 0
  %v126 = vsel %vm110, 1, 0
  %v127 = vsel %vm111, 1, 0
  %v128 = vsel %vm112, 1, 0
  %v129 = vsel %vm113, 1, 0
  %v130 = vsel %vm114, 1, 0
  %v131 = vsel %vm115, 1, 0
  %v132 = vsel %vm116, 1, 0
  %v133 = vsel %vm117, 1, 0
  %v134 = vsel %vm118, 1, 0
  %v135 = vsel %vm119, 1, 0
  %v136 = vsel %vm120, 1, 0
  %v137 = vsel %vm121, 1, 0
  %v138 = vsel %vm122, 1, 0
  %v139 = vsel %vm123, 1, 0
  %v140 = vcvt.s32.f32 %v124
  %v141 = vcvt.s32.f32 %v125
  %v142 = vcvt.s32.f32 %v126
  %v143 = vcvt.s32.f32 %v127
  %v144 = vcvt.s32.f32 %v128
  %v145 = vcvt.s32.f32 %v129
  %v146 = vcvt.s32.f32 %v130
  %v147 = vcvt.s32.f32 %v131
  %v148 = vcvt.s32.f32 %v132
  %v149 = vcvt.s32.f32 %v133
  %v150 = vcvt.s32.f32 %v134
  %v151 = vcvt.s32.f32 %v135
  %v152 = vcvt.s32.f32 %v136
  %v153 = vcvt.s32.f32 %v137
  %v154 = vcvt.s32.f32 %v138
  %v155 = vcvt.s32.f32 %v139
  %v156 = vld [vmem:[%s1] sm:$0xff]
  %v157 = vld [vmem:[%s1 + $0x8] sm:$0xff]
  %v158 = vld [vmem:[%s1 + $0x10] sm:$0xff]
  %v159 = vld [vmem:[%s1 + $0x18] sm:$0xff]
  %v160 = vld [vmem:[%s1 + $0x20] sm:$0xff]
  %v161 = vld [vmem:[%s1 + $0x28] sm:$0xff]
  %v162 = vld [vmem:[%s1 + $0x30] sm:$0x3]
  %vm163 = vcmask 408576
  %v165 = vsel %vm163, %v140, 0
  %v168 = vsel %vm163, %v141, 0
  %v171 = vsel %vm163, %v142, 0
  %v174 = vsel %vm163, %v143, 0
  %v177 = vsel %vm163, %v144, 0
  %v180 = vsel %vm163, %v145, 0
  %v183 = vsel %vm163, %v146, 0
  %v186 = vsel %vm163, %v147, 0
  %v189 = vsel %vm163, %v148, 0
  %v192 = vsel %vm163, %v149, 0
  %v195 = vsel %vm163, %v150, 0
  %v198 = vsel %vm163, %v151, 0
  %v201 = vsel %vm163, %v152, 0
  %v204 = vsel %vm163, %v153, 0
  %v207 = vsel %vm163, %v154, 0
  %v210 = vsel %vm163, %v155, 0
  %vm212 = vcmask 1041408
  %v214 = vsel %vm212, %v162, 0
  %216 = vmatpush.msra.mxu0 0.0
  %217 = vmatpush.msra.mxu0 0.0
  %218 = vmatpush.msra.mxu0 0.0
  %219 = vmatpush.msra.mxu0 0.0
  %220 = vmatpush.msra.mxu0 0.0
  %221 = vmatpush.msra.mxu0 0.0
  %222 = vmatpush.msra.mxu0 0.0
  %223 = vmatpush.msra.mxu0 0.0
  %224 = vmatpush.msra.mxu0 0.0
  %225 = vmatpush.msra.mxu0 %v214
  %226 = vmatpush.msra.mxu0 %v161
  %227 = vmatpush.msra.mxu0 %v160
  %228 = vmatpush.msra.mxu0 %v159
  %229 = vmatpush.msra.mxu0 %v158
  %230 = vmatpush.msra.mxu0 %v157
  %231 = vmatpush.msra.mxu0 %v156
  %232 = vmatmul.f32.gmra.mxu0 %v165
  %v233 = vpop.f32.mrf.mxu0
  %v234 = vadd.f32 0.0, %v233
  %235 = vmatmul.f32.gmra.mxu0 %v168
  %v236 = vpop.f32.mrf.mxu0
  %v237 = vadd.f32 0.0, %v236
  %238 = vmatmul.f32.gmra.mxu0 %v171
  %v239 = vpop.f32.mrf.mxu0
  %v240 = vadd.f32 0.0, %v239
  %241 = vmatmul.f32.gmra.mxu0 %v174
  %v242 = vpop.f32.mrf.mxu0
  %v243 = vadd.f32 0.0, %v242
  %244 = vmatmul.f32.gmra.mxu0 %v177
  %v245 = vpop.f32.mrf.mxu0
  %v246 = vadd.f32 0.0, %v245
  %247 = vmatmul.f32.gmra.mxu0 %v180
  %v248 = vpop.f32.mrf.mxu0
  %v249 = vadd.f32 0.0, %v248
  %250 = vmatmul.f32.gmra.mxu0 %v183
  %v251 = vpop.f32.mrf.mxu0
  %v252 = vadd.f32 0.0, %v251
  %253 = vmatmul.f32.gmra.mxu0 %v186
  %v254 = vpop.f32.mrf.mxu0
  %v255 = vadd.f32 0.0, %v254
  %256 = vmatmul.f32.gmra.mxu0 %v189
  %v257 = vpop.f32.mrf.mxu0
  %v258 = vadd.f32 0.0, %v257
  %259 = vmatmul.f32.gmra.mxu0 %v192
  %v260 = vpop.f32.mrf.mxu0
  %v261 = vadd.f32 0.0, %v260
  %262 = vmatmul.f32.gmra.mxu0 %v195
  %v263 = vpop.f32.mrf.mxu0
  %v264 = vadd.f32 0.0, %v263
  %265 = vmatmul.f32.gmra.mxu0 %v198
  %v266 = vpop.f32.mrf.mxu0
  %v267 = vadd.f32 0.0, %v266
  %268 = vmatmul.f32.gmra.mxu0 %v201
  %v269 = vpop.f32.mrf.mxu0
  %v270 = vadd.f32 0.0, %v269
  %271 = vmatmul.f32.gmra.mxu0 %v204
  %v272 = vpop.f32.mrf.mxu0
  %v273 = vadd.f32 0.0, %v272
  %274 = vmatmul.f32.gmra.mxu0 %v207
  %v275 = vpop.f32.mrf.mxu0
  %v276 = vadd.f32 0.0, %v275
  %277 = vmatmul.f32.gmra.mxu0 %v210
  %v278 = vpop.f32.mrf.mxu0
  %v279 = vadd.f32 0.0, %v278
  %280 = vdwg.mxu0
  %vm281 = vcmp.ge.s32.totalorder %v59, 64
  %vm282 = vcmp.lt.s32.totalorder %v59, 96
  %vm283 = vmand %vm281, %vm282
  %v284 = vpack.c.bf16 %v237, %v234
  %v285 = vpack.c.bf16 %v243, %v240
  %v286 = vpack.c.bf16 %v249, %v246
  %v287 = vpack.c.bf16 %v255, %v252
  %v288 = vpack.c.bf16 %v261, %v258
  %v289 = vpack.c.bf16 %v267, %v264
  %v290 = vpack.c.bf16 %v273, %v270
  %v291 = vpack.c.bf16 %v279, %v276
  %v292 = vld [vmem:[%s2] sm:$0xf]
  %v293 = vld [vmem:[%s2 + $0x4] sm:$0xf]
  %v294 = vld [vmem:[%s3] sm:$0xf]
  %v295 = vld [vmem:[%s3 + $0x4] sm:$0xf]
  %v296 = vld [vmem:[%s3 + $0x8] sm:$0xf]
  %v297 = vld [vmem:[%s3 + $0xc] sm:$0xf]
  %v298 = vld [vmem:[%s4] sm:$0x1]
  %v300 = vperm.slane %v298, 0
  %v304 = vunpack.c.l.b16 %v292
  %v305 = vunpack.c.l.b16 %v293
  %v306 = vpack.c.b16 %v305, %v304
  %vm308 = vcmask 130048
  %v310 = vsel %vm308, %v284, 0
  %v313 = vsel %vm308, %v285, 0
  %v316 = vsel %vm308, %v286, 0
  %v319 = vsel %vm308, %v287, 0
  %v322 = vsel %vm308, %v288, 0
  %v325 = vsel %vm308, %v289, 0
  %v328 = vsel %vm308, %v290, 0
  %v331 = vsel %vm308, %v291, 0
  %333 = vmatpush.bf16.msra.mxu0 0
  %334 = vmatpush.bf16.msra.mxu0 0
  %335 = vmatpush.bf16.msra.mxu0 0
  %336 = vmatpush.bf16.msra.mxu0 0
  %337 = vmatpush.bf16.msra.mxu0 0
  %338 = vmatpush.bf16.msra.mxu0 0
  %339 = vmatpush.bf16.msra.mxu0 0
  %340 = vmatpush.bf16.msra.mxu0 %v306
  %341 = vmatmul.bf16.gmra.mxu0 %v310
  %v342 = vpop.f32.mrf.mxu0
  %v343 = vadd.f32 %v300, %v342
  %v344 = vpop.f32.mrf.mxu0
  %v345 = vadd.f32 %v300, %v344
  %346 = vmatmul.bf16.gmra.mxu0 %v313
  %v347 = vpop.f32.mrf.mxu0
  %v348 = vadd.f32 %v300, %v347
  %v349 = vpop.f32.mrf.mxu0
  %v350 = vadd.f32 %v300, %v349
  %351 = vmatmul.bf16.gmra.mxu0 %v316
  %v352 = vpop.f32.mrf.mxu0
  %v353 = vadd.f32 %v300, %v352
  %v354 = vpop.f32.mrf.mxu0
  %v355 = vadd.f32 %v300, %v354
  %356 = vmatmul.bf16.gmra.mxu0 %v319
  %v357 = vpop.f32.mrf.mxu0
  %v358 = vadd.f32 %v300, %v357
  %v359 = vpop.f32.mrf.mxu0
  %v360 = vadd.f32 %v300, %v359
  %361 = vmatmul.bf16.gmra.mxu0 %v322
  %v362 = vpop.f32.mrf.mxu0
  %v363 = vadd.f32 %v300, %v362
  %v364 = vpop.f32.mrf.mxu0
  %v365 = vadd.f32 %v300, %v364
  %366 = vmatmul.bf16.gmra.mxu0 %v325
  %v367 = vpop.f32.mrf.mxu0
  %v368 = vadd.f32 %v300, %v367
  %v369 = vpop.f32.mrf.mxu0
  %v370 = vadd.f32 %v300, %v369
  %371 = vmatmul.bf16.gmra.mxu0 %v328
  %v372 = vpop.f32.mrf.mxu0
  %v373 = vadd.f32 %v300, %v372
  %v374 = vpop.f32.mrf.mxu0
  %v375 = vadd.f32 %v300, %v374
  %376 = vmatmul.bf16.gmra.mxu0 %v331
  %v377 = vpop.f32.mrf.mxu0
  %v378 = vadd.f32 %v300, %v377
  %v379 = vpop.f32.mrf.mxu0
  %v380 = vadd.f32 %v300, %v379
  %381 = vdwg.mxu0
  %v386 = vunpack.c.l.b16 %v294
  %v387 = vunpack.c.l.b16 %v295
  %v388 = vunpack.c.l.b16 %v296
  %v389 = vunpack.c.l.b16 %v297
  %v390 = vpack.c.b16 %v387, %v386
  %v391 = vpack.c.b16 %v389, %v388
  %vm394 = vcmask 261120
  %v396 = vsel %vm394, 0, 0
  %398 = vmatpush.bf16.msra.mxu0 0
  %399 = vmatpush.bf16.msra.mxu0 0
  %400 = vmatpush.bf16.msra.mxu0 0
  %401 = vmatpush.bf16.msra.mxu0 0
  %402 = vmatpush.bf16.msra.mxu0 0
  %403 = vmatpush.bf16.msra.mxu0 0
  %404 = vmatpush.bf16.msra.mxu0 %v391
  %405 = vmatpush.bf16.msra.mxu0 %v390
  %406 = vmatmul.bf16.gmra.mxu0 %v396
  %v407 = vpop.f32.mrf.mxu0
  %v408 = vadd.f32 0.0, %v407
  %v409 = vpop.f32.mrf.mxu0
  %v410 = vadd.f32 0.0, %v409
  %411 = vdwg.mxu0
  %v412 = vadd.f32 %v343, %v408
  %v413 = vadd.f32 %v345, %v410
  %v414 = vxor.u32 %v412, 2147483648
  %v415 = vxor.u32 %v413, 2147483648
  %v416 = vmul.f32 %v414, 1.442695
  %v417 = vpow.pop %v416
  %v418 = vmul.f32 %v415, 1.442695
  %v419 = vpow.pop %v418
  %v420 = vadd.f32 %v417, 1.0
  %v421 = vadd.f32 %v419, 1.0
  %v422 = vrcp.pop %v420
  %v423 = vmul.f32 %v420, %v422
  %v424 = vsub.f32 1.0, %v423
  %v425 = vmul.f32 %v422, %v424
  %v426 = vadd.f32 %v422, %v425
  %vm427 = vweird.f32 %v420
  %vm428 = vweird.f32 %v422
  %vm429 = vmor %vm427, %vm428
  %v430 = vsel %vm429, %v422, %v426
  %v431 = vand.u32 2147483647, %v420
  %vm432 = vcmp.eq.f32.partialorder %v431, 8.507059e+37
  %v433 = vand.u32 %v420, 2147483648
  %v434 = vor.u32 1.1754944e-38, %v433
  %v435 = vsel %vm432, %v434, %v430
  %v436 = vmul.f32 1.0, %v435
  %v437 = vrcp.pop %v421
  %v438 = vmul.f32 %v421, %v437
  %v439 = vsub.f32 1.0, %v438
  %v440 = vmul.f32 %v437, %v439
  %v441 = vadd.f32 %v437, %v440
  %vm442 = vweird.f32 %v421
  %vm443 = vweird.f32 %v437
  %vm444 = vmor %vm442, %vm443
  %v445 = vsel %vm444, %v437, %v441
  %v446 = vand.u32 2147483647, %v421
  %vm447 = vcmp.eq.f32.partialorder %v446, 8.507059e+37
  %v448 = vand.u32 %v421, 2147483648
  %v449 = vor.u32 1.1754944e-38, %v448
  %v450 = vsel %vm447, %v449, %v445
  %v451 = vmul.f32 1.0, %v450
  %v452 = vmul.f32 %v436, 2.0
  %v453 = vmul.f32 %v451, 2.0
  %v454 = vsub.f32 %v452, 1.0
  %v455 = vsub.f32 %v453, 1.0
  %v456 = vsel %vm283, %v454, %v436
  %v457 = vsel %vm283, %v455, %v451
  %v458 = vmul.f32 %v456, 0.0
  %v459 = vmul.f32 %v457, 0.0
  %462 = vrot.lane.b32.xlu0 %v456, 64
  %v463 = vpop.permute.xlu0 %462
  %464 = vrot.lane.b32.xlu0 %v457, 64
  %v465 = vpop.permute.xlu0 %464
  %v468 = vmul.f32 %v456, %v463
  %v469 = vmul.f32 %v457, %v465
  %472 = vrot.lane.b32.xlu0 %v468, 32
  %v473 = vpop.permute.xlu0 %472
  %474 = vrot.lane.b32.xlu0 %v469, 32
  %v475 = vpop.permute.xlu0 %474
  %v478 = vadd.f32 %v458, %v473
  %v479 = vadd.f32 %v459, %v475
  %v480 = vtanh.pop %v478
  %v481 = vtanh.pop %v479
  %484 = vrot.lane.b32.xlu0 %v480, 64
  %v485 = vpop.permute.xlu0 %484
  %486 = vrot.lane.b32.xlu0 %v481, 64
  %v487 = vpop.permute.xlu0 %486
  %v490 = vmul.f32 %v456, %v485
  %v491 = vmul.f32 %v457, %v487
  %494 = vrot.lane.b32.xlu0 %v490, 32
  %v495 = vpop.permute.xlu0 %494
  %496 = vrot.lane.b32.xlu0 %v491, 32
  %v497 = vpop.permute.xlu0 %496
  %500 = vst.msk [vmem:[#allocation2] sm:$0xff] %vm394, %v495
  %501 = vst.msk [vmem:[#allocation2 + $0x8] sm:$0xff] %vm394, %v497
  %v502 = vpack.c.bf16 %v491, %v490
  %504 = vrot.lane.b32.xlu0 %v502, 32
  %v505 = vpop.permute.xlu0 %504
  %v507 = vsel %vm394, %v505, 0
  %509 = vmatpush.bf16.msra.mxu0 0
  %510 = vmatpush.bf16.msra.mxu0 0
  %511 = vmatpush.bf16.msra.mxu0 0
  %512 = vmatpush.bf16.msra.mxu0 0
  %513 = vmatpush.bf16.msra.mxu0 0
  %514 = vmatpush.bf16.msra.mxu0 0
  %515 = vmatpush.bf16.msra.mxu0 %v391
  %516 = vmatpush.bf16.msra.mxu0 %v390
  %517 = vmatmul.bf16.gmra.mxu0 %v507
  %v518 = vpop.f32.mrf.mxu0
  %v519 = vadd.f32 0.0, %v518
  %v520 = vpop.f32.mrf.mxu0
  %v521 = vadd.f32 0.0, %v520
  %522 = vdwg.mxu0
  %v523 = vadd.f32 %v348, %v519
  %v524 = vadd.f32 %v350, %v521
  %v525 = vxor.u32 %v523, 2147483648
  %v526 = vxor.u32 %v524, 2147483648
  %v527 = vmul.f32 %v525, 1.442695
  %v528 = vpow.pop %v527
  %v529 = vmul.f32 %v526, 1.442695
  %v530 = vpow.pop %v529
  %v531 = vadd.f32 %v528, 1.0
  %v532 = vadd.f32 %v530, 1.0
  %v533 = vrcp.pop %v531
  %v534 = vmul.f32 %v531, %v533
  %v535 = vsub.f32 1.0, %v534
  %v536 = vmul.f32 %v533, %v535
  %v537 = vadd.f32 %v533, %v536
  %vm538 = vweird.f32 %v531
  %vm539 = vweird.f32 %v533
  %vm540 = vmor %vm538, %vm539
  %v541 = vsel %vm540, %v533, %v537
  %v542 = vand.u32 2147483647, %v531
  %vm543 = vcmp.eq.f32.partialorder %v542, 8.507059e+37
  %v544 = vand.u32 %v531, 2147483648
  %v545 = vor.u32 1.1754944e-38, %v544
  %v546 = vsel %vm543, %v545, %v541
  %v547 = vmul.f32 1.0, %v546
  %v548 = vrcp.pop %v532
  %v549 = vmul.f32 %v532, %v548
  %v550 = vsub.f32 1.0, %v549
  %v551 = vmul.f32 %v548, %v550
  %v552 = vadd.f32 %v548, %v551
  %vm553 = vweird.f32 %v532
  %vm554 = vweird.f32 %v548
  %vm555 = vmor %vm553, %vm554
  %v556 = vsel %vm555, %v548, %v552
  %v557 = vand.u32 2147483647, %v532
  %vm558 = vcmp.eq.f32.partialorder %v557, 8.507059e+37
  %v559 = vand.u32 %v532, 2147483648
  %v560 = vor.u32 1.1754944e-38, %v559
  %v561 = vsel %vm558, %v560, %v556
  %v562 = vmul.f32 1.0, %v561
  %v563 = vmul.f32 %v547, 2.0
  %v564 = vmul.f32 %v562, 2.0
  %v565 = vsub.f32 %v563, 1.0
  %v566 = vsub.f32 %v564, 1.0
  %v567 = vsel %vm283, %v565, %v547
  %v568 = vsel %vm283, %v566, %v562
  %v569 = vmul.f32 %v567, %v478
  %v570 = vmul.f32 %v568, %v479
  %573 = vrot.lane.b32.xlu0 %v567, 64
  %v574 = vpop.permute.xlu0 %573
  %575 = vrot.lane.b32.xlu0 %v568, 64
  %v576 = vpop.permute.xlu0 %575
  %v579 = vmul.f32 %v567, %v574
  %v580 = vmul.f32 %v568, %v576
  %583 = vrot.lane.b32.xlu0 %v579, 32
  %v584 = vpop.permute.xlu0 %583
  %585 = vrot.lane.b32.xlu0 %v580, 32
  %v586 = vpop.permute.xlu0 %585
  %v589 = vadd.f32 %v569, %v584
  %v590 = vadd.f32 %v570, %v586
  %v591 = vtanh.pop %v589
  %v592 = vtanh.pop %v590
  %595 = vrot.lane.b32.xlu0 %v591, 64
  %v596 = vpop.permute.xlu0 %595
  %597 = vrot.lane.b32.xlu0 %v592, 64
  %v598 = vpop.permute.xlu0 %597
  %v601 = vmul.f32 %v567, %v596
  %v602 = vmul.f32 %v568, %v598
  %605 = vrot.lane.b32.xlu0 %v601, 32
  %v606 = vpop.permute.xlu0 %605
  %607 = vrot.lane.b32.xlu0 %v602, 32
  %v608 = vpop.permute.xlu0 %607
  %611 = vst.msk [vmem:[#allocation2 + $0x10] sm:$0xff] %vm394, %v606
  %612 = vst.msk [vmem:[#allocation2 + $0x18] sm:$0xff] %vm394, %v608
  %v613 = vpack.c.bf16 %v602, %v601
  %615 = vrot.lane.b32.xlu0 %v613, 32
  %v616 = vpop.permute.xlu0 %615
  %v618 = vsel %vm394, %v616, 0
  %620 = vmatpush.bf16.msra.mxu0 0
  %621 = vmatpush.bf16.msra.mxu0 0
  %622 = vmatpush.bf16.msra.mxu0 0
  %623 = vmatpush.bf16.msra.mxu0 0
  %624 = vmatpush.bf16.msra.mxu0 0
  %625 = vmatpush.bf16.msra.mxu0 0
  %626 = vmatpush.bf16.msra.mxu0 %v391
  %627 = vmatpush.bf16.msra.mxu0 %v390
  %628 = vmatmul.bf16.gmra.mxu0 %v618
  %v629 = vpop.f32.mrf.mxu0
  %v630 = vadd.f32 0.0, %v629
  %v631 = vpop.f32.mrf.mxu0
  %v632 = vadd.f32 0.0, %v631
  %633 = vdwg.mxu0
  %v634 = vadd.f32 %v353, %v630
  %v635 = vadd.f32 %v355, %v632
  %v636 = vxor.u32 %v634, 2147483648
  %v637 = vxor.u32 %v635, 2147483648
  %v638 = vmul.f32 %v636, 1.442695
  %v639 = vpow.pop %v638
  %v640 = vmul.f32 %v637, 1.442695
  %v641 = vpow.pop %v640
  %v642 = vadd.f32 %v639, 1.0
  %v643 = vadd.f32 %v641, 1.0
  %v644 = vrcp.pop %v642
  %v645 = vmul.f32 %v642, %v644
  %v646 = vsub.f32 1.0, %v645
  %v647 = vmul.f32 %v644, %v646
  %v648 = vadd.f32 %v644, %v647
  %vm649 = vweird.f32 %v642
  %vm650 = vweird.f32 %v644
  %vm651 = vmor %vm649, %vm650
  %v652 = vsel %vm651, %v644, %v648
  %v653 = vand.u32 2147483647, %v642
  %vm654 = vcmp.eq.f32.partialorder %v653, 8.507059e+37
  %v655 = vand.u32 %v642, 2147483648
  %v656 = vor.u32 1.1754944e-38, %v655
  %v657 = vsel %vm654, %v656, %v652
  %v658 = vmul.f32 1.0, %v657
  %v659 = vrcp.pop %v643
  %v660 = vmul.f32 %v643, %v659
  %v661 = vsub.f32 1.0, %v660
  %v662 = vmul.f32 %v659, %v661
  %v663 = vadd.f32 %v659, %v662
  %vm664 = vweird.f32 %v643
  %vm665 = vweird.f32 %v659
  %vm666 = vmor %vm664, %vm665
  %v667 = vsel %vm666, %v659, %v663
  %v668 = vand.u32 2147483647, %v643
  %vm669 = vcmp.eq.f32.partialorder %v668, 8.507059e+37
  %v670 = vand.u32 %v643, 2147483648
  %v671 = vor.u32 1.1754944e-38, %v670
  %v672 = vsel %vm669, %v671, %v667
  %v673 = vmul.f32 1.0, %v672
  %v674 = vmul.f32 %v658, 2.0
  %v675 = vmul.f32 %v673, 2.0
  %v676 = vsub.f32 %v674, 1.0
  %v677 = vsub.f32 %v675, 1.0
  %v678 = vsel %vm283, %v676, %v658
  %v679 = vsel %vm283, %v677, %v673
  %v680 = vmul.f32 %v678, %v589
  %v681 = vmul.f32 %v679, %v590
  %684 = vrot.lane.b32.xlu0 %v678, 64
  %v685 = vpop.permute.xlu0 %684
  %686 = vrot.lane.b32.xlu0 %v679, 64
  %v687 = vpop.permute.xlu0 %686
  %v690 = vmul.f32 %v678, %v685
  %v691 = vmul.f32 %v679, %v687
  %694 = vrot.lane.b32.xlu0 %v690, 32
  %v695 = vpop.permute.xlu0 %694
  %696 = vrot.lane.b32.xlu0 %v691, 32
  %v697 = vpop.permute.xlu0 %696
  %v700 = vadd.f32 %v680, %v695
  %v701 = vadd.f32 %v681, %v697
  %v702 = vtanh.pop %v700
  %v703 = vtanh.pop %v701
  %706 = vrot.lane.b32.xlu0 %v702, 64
  %v707 = vpop.permute.xlu0 %706
  %708 = vrot.lane.b32.xlu0 %v703, 64
  %v709 = vpop.permute.xlu0 %708
  %v712 = vmul.f32 %v678, %v707
  %v713 = vmul.f32 %v679, %v709
  %716 = vrot.lane.b32.xlu0 %v712, 32
  %v717 = vpop.permute.xlu0 %716
  %718 = vrot.lane.b32.xlu0 %v713, 32
  %v719 = vpop.permute.xlu0 %718
  %722 = vst.msk [vmem:[#allocation2 + $0x20] sm:$0xff] %vm394, %v717
  %723 = vst.msk [vmem:[#allocation2 + $0x28] sm:$0xff] %vm394, %v719
  %v724 = vpack.c.bf16 %v713, %v712
  %726 = vrot.lane.b32.xlu0 %v724, 32
  %v727 = vpop.permute.xlu0 %726
  %v729 = vsel %vm394, %v727, 0
  %731 = vmatpush.bf16.msra.mxu0 0
  %732 = vmatpush.bf16.msra.mxu0 0
  %733 = vmatpush.bf16.msra.mxu0 0
  %734 = vmatpush.bf16.msra.mxu0 0
  %735 = vmatpush.bf16.msra.mxu0 0
  %736 = vmatpush.bf16.msra.mxu0 0
  %737 = vmatpush.bf16.msra.mxu0 %v391
  %738 = vmatpush.bf16.msra.mxu0 %v390
  %739 = vmatmul.bf16.gmra.mxu0 %v729
  %v740 = vpop.f32.mrf.mxu0
  %v741 = vadd.f32 0.0, %v740
  %v742 = vpop.f32.mrf.mxu0
  %v743 = vadd.f32 0.0, %v742
  %744 = vdwg.mxu0
  %v745 = vadd.f32 %v358, %v741
  %v746 = vadd.f32 %v360, %v743
  %v747 = vxor.u32 %v745, 2147483648
  %v748 = vxor.u32 %v746, 2147483648
  %v749 = vmul.f32 %v747, 1.442695
  %v750 = vpow.pop %v749
  %v751 = vmul.f32 %v748, 1.442695
  %v752 = vpow.pop %v751
  %v753 = vadd.f32 %v750, 1.0
  %v754 = vadd.f32 %v752, 1.0
  %v755 = vrcp.pop %v753
  %v756 = vmul.f32 %v753, %v755
  %v757 = vsub.f32 1.0, %v756
  %v758 = vmul.f32 %v755, %v757
  %v759 = vadd.f32 %v755, %v758
  %vm760 = vweird.f32 %v753
  %vm761 = vweird.f32 %v755
  %vm762 = vmor %vm760, %vm761
  %v763 = vsel %vm762, %v755, %v759
  %v764 = vand.u32 2147483647, %v753
  %vm765 = vcmp.eq.f32.partialorder %v764, 8.507059e+37
  %v766 = vand.u32 %v753, 2147483648
  %v767 = vor.u32 1.1754944e-38, %v766
  %v768 = vsel %vm765, %v767, %v763
  %v769 = vmul.f32 1.0, %v768
  %v770 = vrcp.pop %v754
  %v771 = vmul.f32 %v754, %v770
  %v772 = vsub.f32 1.0, %v771
  %v773 = vmul.f32 %v770, %v772
  %v774 = vadd.f32 %v770, %v773
  %vm775 = vweird.f32 %v754
  %vm776 = vweird.f32 %v770
  %vm777 = vmor %vm775, %vm776
  %v778 = vsel %vm777, %v770, %v774
  %v779 = vand.u32 2147483647, %v754
  %vm780 = vcmp.eq.f32.partialorder %v779, 8.507059e+37
  %v781 = vand.u32 %v754, 2147483648
  %v782 = vor.u32 1.1754944e-38, %v781
  %v783 = vsel %vm780, %v782, %v778
  %v784 = vmul.f32 1.0, %v783
  %v785 = vmul.f32 %v769, 2.0
  %v786 = vmul.f32 %v784, 2.0
  %v787 = vsub.f32 %v785, 1.0
  %v788 = vsub.f32 %v786, 1.0
  %v789 = vsel %vm283, %v787, %v769
  %v790 = vsel %vm283, %v788, %v784
  %v791 = vmul.f32 %v789, %v700
  %v792 = vmul.f32 %v790, %v701
  %795 = vrot.lane.b32.xlu0 %v789, 64
  %v796 = vpop.permute.xlu0 %795
  %797 = vrot.lane.b32.xlu0 %v790, 64
  %v798 = vpop.permute.xlu0 %797
  %v801 = vmul.f32 %v789, %v796
  %v802 = vmul.f32 %v790, %v798
  %805 = vrot.lane.b32.xlu0 %v801, 32
  %v806 = vpop.permute.xlu0 %805
  %807 = vrot.lane.b32.xlu0 %v802, 32
  %v808 = vpop.permute.xlu0 %807
  %v811 = vadd.f32 %v791, %v806
  %v812 = vadd.f32 %v792, %v808
  %v813 = vtanh.pop %v811
  %v814 = vtanh.pop %v812
  %817 = vrot.lane.b32.xlu0 %v813, 64
  %v818 = vpop.permute.xlu0 %817
  %819 = vrot.lane.b32.xlu0 %v814, 64
  %v820 = vpop.permute.xlu0 %819
  %v823 = vmul.f32 %v789, %v818
  %v824 = vmul.f32 %v790, %v820
  %827 = vrot.lane.b32.xlu0 %v823, 32
  %v828 = vpop.permute.xlu0 %827
  %829 = vrot.lane.b32.xlu0 %v824, 32
  %v830 = vpop.permute.xlu0 %829
  %833 = vst.msk [vmem:[#allocation2 + $0x30] sm:$0xff] %vm394, %v828
  %834 = vst.msk [vmem:[#allocation2 + $0x38] sm:$0xff] %vm394, %v830
  %v835 = vpack.c.bf16 %v824, %v823
  %837 = vrot.lane.b32.xlu0 %v835, 32
  %v838 = vpop.permute.xlu0 %837
  %v840 = vsel %vm394, %v838, 0
  %842 = vmatpush.bf16.msra.mxu0 0
  %843 = vmatpush.bf16.msra.mxu0 0
  %844 = vmatpush.bf16.msra.mxu0 0
  %845 = vmatpush.bf16.msra.mxu0 0
  %846 = vmatpush.bf16.msra.mxu0 0
  %847 = vmatpush.bf16.msra.mxu0 0
  %848 = vmatpush.bf16.msra.mxu0 %v391
  %849 = vmatpush.bf16.msra.mxu0 %v390
  %850 = vmatmul.bf16.gmra.mxu0 %v840
  %v851 = vpop.f32.mrf.mxu0
  %v852 = vadd.f32 0.0, %v851
  %v853 = vpop.f32.mrf.mxu0
  %v854 = vadd.f32 0.0, %v853
  %855 = vdwg.mxu0
  %v856 = vadd.f32 %v363, %v852
  %v857 = vadd.f32 %v365, %v854
  %v858 = vxor.u32 %v856, 2147483648
  %v859 = vxor.u32 %v857, 2147483648
  %v860 = vmul.f32 %v858, 1.442695
  %v861 = vpow.pop %v860
  %v862 = vmul.f32 %v859, 1.442695
  %v863 = vpow.pop %v862
  %v864 = vadd.f32 %v861, 1.0
  %v865 = vadd.f32 %v863, 1.0
  %v866 = vrcp.pop %v864
  %v867 = vmul.f32 %v864, %v866
  %v868 = vsub.f32 1.0, %v867
  %v869 = vmul.f32 %v866, %v868
  %v870 = vadd.f32 %v866, %v869
  %vm871 = vweird.f32 %v864
  %vm872 = vweird.f32 %v866
  %vm873 = vmor %vm871, %vm872
  %v874 = vsel %vm873, %v866, %v870
  %v875 = vand.u32 2147483647, %v864
  %vm876 = vcmp.eq.f32.partialorder %v875, 8.507059e+37
  %v877 = vand.u32 %v864, 2147483648
  %v878 = vor.u32 1.1754944e-38, %v877
  %v879 = vsel %vm876, %v878, %v874
  %v880 = vmul.f32 1.0, %v879
  %v881 = vrcp.pop %v865
  %v882 = vmul.f32 %v865, %v881
  %v883 = vsub.f32 1.0, %v882
  %v884 = vmul.f32 %v881, %v883
  %v885 = vadd.f32 %v881, %v884
  %vm886 = vweird.f32 %v865
  %vm887 = vweird.f32 %v881
  %vm888 = vmor %vm886, %vm887
  %v889 = vsel %vm888, %v881, %v885
  %v890 = vand.u32 2147483647, %v865
  %vm891 = vcmp.eq.f32.partialorder %v890, 8.507059e+37
  %v892 = vand.u32 %v865, 2147483648
  %v893 = vor.u32 1.1754944e-38, %v892
  %v894 = vsel %vm891, %v893, %v889
  %v895 = vmul.f32 1.0, %v894
  %v896 = vmul.f32 %v880, 2.0
  %v897 = vmul.f32 %v895, 2.0
  %v898 = vsub.f32 %v896, 1.0
  %v899 = vsub.f32 %v897, 1.0
  %v900 = vsel %vm283, %v898, %v880
  %v901 = vsel %vm283, %v899, %v895
  %v902 = vmul.f32 %v900, %v811
  %v903 = vmul.f32 %v901, %v812
  %906 = vrot.lane.b32.xlu0 %v900, 64
  %v907 = vpop.permute.xlu0 %906
  %908 = vrot.lane.b32.xlu0 %v901, 64
  %v909 = vpop.permute.xlu0 %908
  %v912 = vmul.f32 %v900, %v907
  %v913 = vmul.f32 %v901, %v909
  %916 = vrot.lane.b32.xlu0 %v912, 32
  %v917 = vpop.permute.xlu0 %916
  %918 = vrot.lane.b32.xlu0 %v913, 32
  %v919 = vpop.permute.xlu0 %918
  %v922 = vadd.f32 %v902, %v917
  %v923 = vadd.f32 %v903, %v919
  %v924 = vtanh.pop %v922
  %v925 = vtanh.pop %v923
  %928 = vrot.lane.b32.xlu0 %v924, 64
  %v929 = vpop.permute.xlu0 %928
  %930 = vrot.lane.b32.xlu0 %v925, 64
  %v931 = vpop.permute.xlu0 %930
  %v934 = vmul.f32 %v900, %v929
  %v935 = vmul.f32 %v901, %v931
  %938 = vrot.lane.b32.xlu0 %v934, 32
  %v939 = vpop.permute.xlu0 %938
  %940 = vrot.lane.b32.xlu0 %v935, 32
  %v941 = vpop.permute.xlu0 %940
  %944 = vst.msk [vmem:[#allocation2 + $0x40] sm:$0xff] %vm394, %v939
  %945 = vst.msk [vmem:[#allocation2 + $0x48] sm:$0xff] %vm394, %v941
  %v946 = vpack.c.bf16 %v935, %v934
  %948 = vrot.lane.b32.xlu0 %v946, 32
  %v949 = vpop.permute.xlu0 %948
  %v951 = vsel %vm394, %v949, 0
  %953 = vmatpush.bf16.msra.mxu0 0
  %954 = vmatpush.bf16.msra.mxu0 0
  %955 = vmatpush.bf16.msra.mxu0 0
  %956 = vmatpush.bf16.msra.mxu0 0
  %957 = vmatpush.bf16.msra.mxu0 0
  %958 = vmatpush.bf16.msra.mxu0 0
  %959 = vmatpush.bf16.msra.mxu0 %v391
  %960 = vmatpush.bf16.msra.mxu0 %v390
  %961 = vmatmul.bf16.gmra.mxu0 %v951
  %v962 = vpop.f32.mrf.mxu0
  %v963 = vadd.f32 0.0, %v962
  %v964 = vpop.f32.mrf.mxu0
  %v965 = vadd.f32 0.0, %v964
  %966 = vdwg.mxu0
  %v967 = vadd.f32 %v368, %v963
  %v968 = vadd.f32 %v370, %v965
  %v969 = vxor.u32 %v967, 2147483648
  %v970 = vxor.u32 %v968, 2147483648
  %v971 = vmul.f32 %v969, 1.442695
  %v972 = vpow.pop %v971
  %v973 = vmul.f32 %v970, 1.442695
  %v974 = vpow.pop %v973
  %v975 = vadd.f32 %v972, 1.0
  %v976 = vadd.f32 %v974, 1.0
  %v977 = vrcp.pop %v975
  %v978 = vmul.f32 %v975, %v977
  %v979 = vsub.f32 1.0, %v978
  %v980 = vmul.f32 %v977, %v979
  %v981 = vadd.f32 %v977, %v980
  %vm982 = vweird.f32 %v975
  %vm983 = vweird.f32 %v977
  %vm984 = vmor %vm982, %vm983
  %v985 = vsel %vm984, %v977, %v981
  %v986 = vand.u32 2147483647, %v975
  %vm987 = vcmp.eq.f32.partialorder %v986, 8.507059e+37
  %v988 = vand.u32 %v975, 2147483648
  %v989 = vor.u32 1.1754944e-38, %v988
  %v990 = vsel %vm987, %v989, %v985
  %v991 = vmul.f32 1.0, %v990
  %v992 = vrcp.pop %v976
  %v993 = vmul.f32 %v976, %v992
  %v994 = vsub.f32 1.0, %v993
  %v995 = vmul.f32 %v992, %v994
  %v996 = vadd.f32 %v992, %v995
  %vm997 = vweird.f32 %v976
  %vm998 = vweird.f32 %v992
  %vm999 = vmor %vm997, %vm998
  %v1000 = vsel %vm999, %v992, %v996
  %v1001 = vand.u32 2147483647, %v976
  %vm1002 = vcmp.eq.f32.partialorder %v1001, 8.507059e+37
  %v1003 = vand.u32 %v976, 2147483648
  %v1004 = vor.u32 1.1754944e-38, %v1003
  %v1005 = vsel %vm1002, %v1004, %v1000
  %v1006 = vmul.f32 1.0, %v1005
  %v1007 = vmul.f32 %v991, 2.0
  %v1008 = vmul.f32 %v1006, 2.0
  %v1009 = vsub.f32 %v1007, 1.0
  %v1010 = vsub.f32 %v1008, 1.0
  %v1011 = vsel %vm283, %v1009, %v991
  %v1012 = vsel %vm283, %v1010, %v1006
  %v1013 = vmul.f32 %v1011, %v922
  %v1014 = vmul.f32 %v1012, %v923
  %1017 = vrot.lane.b32.xlu0 %v1011, 64
  %v1018 = vpop.permute.xlu0 %1017
  %1019 = vrot.lane.b32.xlu0 %v1012, 64
  %v1020 = vpop.permute.xlu0 %1019
  %v1023 = vmul.f32 %v1011, %v1018
  %v1024 = vmul.f32 %v1012, %v1020
  %1027 = vrot.lane.b32.xlu0 %v1023, 32
  %v1028 = vpop.permute.xlu0 %1027
  %1029 = vrot.lane.b32.xlu0 %v1024, 32
  %v1030 = vpop.permute.xlu0 %1029
  %v1033 = vadd.f32 %v1013, %v1028
  %v1034 = vadd.f32 %v1014, %v1030
  %v1035 = vtanh.pop %v1033
  %v1036 = vtanh.pop %v1034
  %1039 = vrot.lane.b32.xlu0 %v1035, 64
  %v1040 = vpop.permute.xlu0 %1039
  %1041 = vrot.lane.b32.xlu0 %v1036, 64
  %v1042 = vpop.permute.xlu0 %1041
  %v1045 = vmul.f32 %v1011, %v1040
  %v1046 = vmul.f32 %v1012, %v1042
  %1049 = vrot.lane.b32.xlu0 %v1045, 32
  %v1050 = vpop.permute.xlu0 %1049
  %1051 = vrot.lane.b32.xlu0 %v1046, 32
  %v1052 = vpop.permute.xlu0 %1051
  %1055 = vst.msk [vmem:[#allocation2 + $0x50] sm:$0xff] %vm394, %v1050
  %1056 = vst.msk [vmem:[#allocation2 + $0x58] sm:$0xff] %vm394, %v1052
  %v1057 = vpack.c.bf16 %v1046, %v1045
  %1059 = vrot.lane.b32.xlu0 %v1057, 32
  %v1060 = vpop.permute.xlu0 %1059
  %v1062 = vsel %vm394, %v1060, 0
  %1064 = vmatpush.bf16.msra.mxu0 0
  %1065 = vmatpush.bf16.msra.mxu0 0
  %1066 = vmatpush.bf16.msra.mxu0 0
  %1067 = vmatpush.bf16.msra.mxu0 0
  %1068 = vmatpush.bf16.msra.mxu0 0
  %1069 = vmatpush.bf16.msra.mxu0 0
  %1070 = vmatpush.bf16.msra.mxu0 %v391
  %1071 = vmatpush.bf16.msra.mxu0 %v390
  %1072 = vmatmul.bf16.gmra.mxu0 %v1062
  %v1073 = vpop.f32.mrf.mxu0
  %v1074 = vadd.f32 0.0, %v1073
  %v1075 = vpop.f32.mrf.mxu0
  %v1076 = vadd.f32 0.0, %v1075
  %1077 = vdwg.mxu0
  %v1078 = vadd.f32 %v373, %v1074
  %v1079 = vadd.f32 %v375, %v1076
  %v1080 = vxor.u32 %v1078, 2147483648
  %v1081 = vxor.u32 %v1079, 2147483648
  %v1082 = vmul.f32 %v1080, 1.442695
  %v1083 = vpow.pop %v1082
  %v1084 = vmul.f32 %v1081, 1.442695
  %v1085 = vpow.pop %v1084
  %v1086 = vadd.f32 %v1083, 1.0
  %v1087 = vadd.f32 %v1085, 1.0
  %v1088 = vrcp.pop %v1086
  %v1089 = vmul.f32 %v1086, %v1088
  %v1090 = vsub.f32 1.0, %v1089
  %v1091 = vmul.f32 %v1088, %v1090
  %v1092 = vadd.f32 %v1088, %v1091
  %vm1093 = vweird.f32 %v1086
  %vm1094 = vweird.f32 %v1088
  %vm1095 = vmor %vm1093, %vm1094
  %v1096 = vsel %vm1095, %v1088, %v1092
  %v1097 = vand.u32 2147483647, %v1086
  %vm1098 = vcmp.eq.f32.partialorder %v1097, 8.507059e+37
  %v1099 = vand.u32 %v1086, 2147483648
  %v1100 = vor.u32 1.1754944e-38, %v1099
  %v1101 = vsel %vm1098, %v1100, %v1096
  %v1102 = vmul.f32 1.0, %v1101
  %v1103 = vrcp.pop %v1087
  %v1104 = vmul.f32 %v1087, %v1103
  %v1105 = vsub.f32 1.0, %v1104
  %v1106 = vmul.f32 %v1103, %v1105
  %v1107 = vadd.f32 %v1103, %v1106
  %vm1108 = vweird.f32 %v1087
  %vm1109 = vweird.f32 %v1103
  %vm1110 = vmor %vm1108, %vm1109
  %v1111 = vsel %vm1110, %v1103, %v1107
  %v1112 = vand.u32 2147483647, %v1087
  %vm1113 = vcmp.eq.f32.partialorder %v1112, 8.507059e+37
  %v1114 = vand.u32 %v1087, 2147483648
  %v1115 = vor.u32 1.1754944e-38, %v1114
  %v1116 = vsel %vm1113, %v1115, %v1111
  %v1117 = vmul.f32 1.0, %v1116
  %v1118 = vmul.f32 %v1102, 2.0
  %v1119 = vmul.f32 %v1117, 2.0
  %v1120 = vsub.f32 %v1118, 1.0
  %v1121 = vsub.f32 %v1119, 1.0
  %v1122 = vsel %vm283, %v1120, %v1102
  %v1123 = vsel %vm283, %v1121, %v1117
  %v1124 = vmul.f32 %v1122, %v1033
  %v1125 = vmul.f32 %v1123, %v1034
  %1128 = vrot.lane.b32.xlu0 %v1122, 64
  %v1129 = vpop.permute.xlu0 %1128
  %1130 = vrot.lane.b32.xlu0 %v1123, 64
  %v1131 = vpop.permute.xlu0 %1130
  %v1134 = vmul.f32 %v1122, %v1129
  %v1135 = vmul.f32 %v1123, %v1131
  %1138 = vrot.lane.b32.xlu0 %v1134, 32
  %v1139 = vpop.permute.xlu0 %1138
  %1140 = vrot.lane.b32.xlu0 %v1135, 32
  %v1141 = vpop.permute.xlu0 %1140
  %v1144 = vadd.f32 %v1124, %v1139
  %v1145 = vadd.f32 %v1125, %v1141
  %v1146 = vtanh.pop %v1144
  %v1147 = vtanh.pop %v1145
  %1150 = vrot.lane.b32.xlu0 %v1146, 64
  %v1151 = vpop.permute.xlu0 %1150
  %1152 = vrot.lane.b32.xlu0 %v1147, 64
  %v1153 = vpop.permute.xlu0 %1152
  %v1156 = vmul.f32 %v1122, %v1151
  %v1157 = vmul.f32 %v1123, %v1153
  %1160 = vrot.lane.b32.xlu0 %v1156, 32
  %v1161 = vpop.permute.xlu0 %1160
  %1162 = vrot.lane.b32.xlu0 %v1157, 32
  %v1163 = vpop.permute.xlu0 %1162
  %1166 = vst.msk [vmem:[#allocation2 + $0x60] sm:$0xff] %vm394, %v1161
  %1167 = vst.msk [vmem:[#allocation2 + $0x68] sm:$0xff] %vm394, %v1163
  %v1168 = vpack.c.bf16 %v1157, %v1156
  %1170 = vrot.lane.b32.xlu0 %v1168, 32
  %v1171 = vpop.permute.xlu0 %1170
  %v1173 = vsel %vm394, %v1171, 0
  %1175 = vmatpush.bf16.msra.mxu0 0
  %1176 = vmatpush.bf16.msra.mxu0 0
  %1177 = vmatpush.bf16.msra.mxu0 0
  %1178 = vmatpush.bf16.msra.mxu0 0
  %1179 = vmatpush.bf16.msra.mxu0 0
  %1180 = vmatpush.bf16.msra.mxu0 0
  %1181 = vmatpush.bf16.msra.mxu0 %v391
  %1182 = vmatpush.bf16.msra.mxu0 %v390
  %1183 = vmatmul.bf16.gmra.mxu0 %v1173
  %v1184 = vpop.f32.mrf.mxu0
  %v1185 = vadd.f32 0.0, %v1184
  %v1186 = vpop.f32.mrf.mxu0
  %v1187 = vadd.f32 0.0, %v1186
  %1188 = vdwg.mxu0
  %v1189 = vadd.f32 %v378, %v1185
  %v1190 = vadd.f32 %v380, %v1187
  %v1191 = vxor.u32 %v1189, 2147483648
  %v1192 = vxor.u32 %v1190, 2147483648
  %v1193 = vmul.f32 %v1191, 1.442695
  %v1194 = vpow.pop %v1193
  %v1195 = vmul.f32 %v1192, 1.442695
  %v1196 = vpow.pop %v1195
  %v1197 = vadd.f32 %v1194, 1.0
  %v1198 = vadd.f32 %v1196, 1.0
  %v1199 = vrcp.pop %v1197
  %v1200 = vmul.f32 %v1197, %v1199
  %v1201 = vsub.f32 1.0, %v1200
  %v1202 = vmul.f32 %v1199, %v1201
  %v1203 = vadd.f32 %v1199, %v1202
  %vm1204 = vweird.f32 %v1197
  %vm1205 = vweird.f32 %v1199
  %vm1206 = vmor %vm1204, %vm1205
  %v1207 = vsel %vm1206, %v1199, %v1203
  %v1208 = vand.u32 2147483647, %v1197
  %vm1209 = vcmp.eq.f32.partialorder %v1208, 8.507059e+37
  %v1210 = vand.u32 %v1197, 2147483648
  %v1211 = vor.u32 1.1754944e-38, %v1210
  %v1212 = vsel %vm1209, %v1211, %v1207
  %v1213 = vmul.f32 1.0, %v1212
  %v1214 = vrcp.pop %v1198
  %v1215 = vmul.f32 %v1198, %v1214
  %v1216 = vsub.f32 1.0, %v1215
  %v1217 = vmul.f32 %v1214, %v1216
  %v1218 = vadd.f32 %v1214, %v1217
  %vm1219 = vweird.f32 %v1198
  %vm1220 = vweird.f32 %v1214
  %vm1221 = vmor %vm1219, %vm1220
  %v1222 = vsel %vm1221, %v1214, %v1218
  %v1223 = vand.u32 2147483647, %v1198
  %vm1224 = vcmp.eq.f32.partialorder %v1223, 8.507059e+37
  %v1225 = vand.u32 %v1198, 2147483648
  %v1226 = vor.u32 1.1754944e-38, %v1225
  %v1227 = vsel %vm1224, %v1226, %v1222
  %v1228 = vmul.f32 1.0, %v1227
  %v1229 = vmul.f32 %v1213, 2.0
  %v1230 = vmul.f32 %v1228, 2.0
  %v1231 = vsub.f32 %v1229, 1.0
  %v1232 = vsub.f32 %v1230, 1.0
  %v1233 = vsel %vm283, %v1231, %v1213
  %v1234 = vsel %vm283, %v1232, %v1228
  %v1235 = vmul.f32 %v1233, %v1144
  %v1236 = vmul.f32 %v1234, %v1145
  %1239 = vrot.lane.b32.xlu0 %v1233, 64
  %v1240 = vpop.permute.xlu0 %1239
  %1241 = vrot.lane.b32.xlu0 %v1234, 64
  %v1242 = vpop.permute.xlu0 %1241
  %v1245 = vmul.f32 %v1233, %v1240
  %v1246 = vmul.f32 %v1234, %v1242
  %1249 = vrot.lane.b32.xlu0 %v1245, 32
  %v1250 = vpop.permute.xlu0 %1249
  %1251 = vrot.lane.b32.xlu0 %v1246, 32
  %v1252 = vpop.permute.xlu0 %1251
  %v1255 = vadd.f32 %v1235, %v1250
  %v1256 = vadd.f32 %v1236, %v1252
  %v1257 = vtanh.pop %v1255
  %v1258 = vtanh.pop %v1256
  %1261 = vrot.lane.b32.xlu0 %v1257, 64
  %v1262 = vpop.permute.xlu0 %1261
  %1263 = vrot.lane.b32.xlu0 %v1258, 64
  %v1264 = vpop.permute.xlu0 %1263
  %v1267 = vmul.f32 %v1233, %v1262
  %v1268 = vmul.f32 %v1234, %v1264
  %1271 = vrot.lane.b32.xlu0 %v1267, 32
  %v1272 = vpop.permute.xlu0 %1271
  %1273 = vrot.lane.b32.xlu0 %v1268, 32
  %v1274 = vpop.permute.xlu0 %1273
  %1277 = vst.msk [vmem:[#allocation2 + $0x70] sm:$0xff] %vm394, %v1272
  %1278 = vst.msk [vmem:[#allocation2 + $0x78] sm:$0xff] %vm394, %v1274
  %v1279 = vld [vmem:[#allocation2] sm:$0xff]
  %v1280 = vld [vmem:[#allocation2 + $0x8] sm:$0xff]
  %v1281 = vld [vmem:[#allocation2 + $0x10] sm:$0xff]
  %v1282 = vld [vmem:[#allocation2 + $0x18] sm:$0xff]
  %v1283 = vld [vmem:[#allocation2 + $0x20] sm:$0xff]
  %v1284 = vld [vmem:[#allocation2 + $0x28] sm:$0xff]
  %v1285 = vld [vmem:[#allocation2 + $0x30] sm:$0xff]
  %v1286 = vld [vmem:[#allocation2 + $0x38] sm:$0xff]
  %v1287 = vld [vmem:[#allocation2 + $0x40] sm:$0xff]
  %v1288 = vld [vmem:[#allocation2 + $0x48] sm:$0xff]
  %v1289 = vld [vmem:[#allocation2 + $0x50] sm:$0xff]
  %v1290 = vld [vmem:[#allocation2 + $0x58] sm:$0xff]
  %v1291 = vld [vmem:[#allocation2 + $0x60] sm:$0xff]
  %v1292 = vld [vmem:[#allocation2 + $0x68] sm:$0xff]
  %v1293 = vld [vmem:[#allocation2 + $0x70] sm:$0xff]
  %v1294 = vld [vmem:[#allocation2 + $0x78] sm:$0xff]
  %v1295 = vpack.c.bf16 %v1280, %v1279
  %v1296 = vpack.c.bf16 %v1282, %v1281
  %v1297 = vpack.c.bf16 %v1284, %v1283
  %v1298 = vpack.c.bf16 %v1286, %v1285
  %v1299 = vpack.c.bf16 %v1288, %v1287
  %v1300 = vpack.c.bf16 %v1290, %v1289
  %v1301 = vpack.c.bf16 %v1292, %v1291
  %v1302 = vpack.c.bf16 %v1294, %v1293
  %v1303 = vld [vmem:[%s5] sm:$0xf]
  %v1304 = vld [vmem:[%s5 + $0x4] sm:$0xf]
  %v1305 = vld [vmem:[%s5 + $0x8] sm:$0xf]
  %v1306 = vld [vmem:[%s5 + $0xc] sm:$0xf]
  %v1307 = vld [vmem:[%s6] sm:$0xf]
  %v1308 = vld [vmem:[%s6 + $0x4] sm:$0xf]
  %v1309 = vld [vmem:[%s6 + $0x8] sm:$0xf]
  %v1310 = vld [vmem:[%s6 + $0xc] sm:$0xf]
  %v1311 = vld [vmem:[%s7] sm:$0x1]
  %v1313 = vperm.slane %v1311, 0
  %v1319 = vunpack.c.l.b16 %v1303
  %v1320 = vunpack.c.l.b16 %v1304
  %v1321 = vunpack.c.l.b16 %v1305
  %v1322 = vunpack.c.l.b16 %v1306
  %v1323 = vpack.c.b16 %v1320, %v1319
  %v1324 = vpack.c.b16 %v1322, %v1321
  %v1328 = vsel %vm394, %v1295, 0
  %v1331 = vsel %vm394, %v1296, 0
  %v1334 = vsel %vm394, %v1297, 0
  %v1337 = vsel %vm394, %v1298, 0
  %v1340 = vsel %vm394, %v1299, 0
  %v1343 = vsel %vm394, %v1300, 0
  %v1346 = vsel %vm394, %v1301, 0
  %v1349 = vsel %vm394, %v1302, 0
  %1351 = vmatpush.bf16.msra.mxu0 0
  %1352 = vmatpush.bf16.msra.mxu0 0
  %1353 = vmatpush.bf16.msra.mxu0 0
  %1354 = vmatpush.bf16.msra.mxu0 0
  %1355 = vmatpush.bf16.msra.mxu0 0
  %1356 = vmatpush.bf16.msra.mxu0 0
  %1357 = vmatpush.bf16.msra.mxu0 %v1324
  %1358 = vmatpush.bf16.msra.mxu0 %v1323
  %1359 = vmatmul.bf16.gmra.mxu0 %v1328
  %v1360 = vpop.f32.mrf.mxu0
  %v1361 = vadd.f32 %v1313, %v1360
  %v1362 = vpop.f32.mrf.mxu0
  %v1363 = vadd.f32 %v1313, %v1362
  %1364 = vmatmul.bf16.gmra.mxu0 %v1331
  %v1365 = vpop.f32.mrf.mxu0
  %v1366 = vadd.f32 %v1313, %v1365
  %v1367 = vpop.f32.mrf.mxu0
  %v1368 = vadd.f32 %v1313, %v1367
  %1369 = vmatmul.bf16.gmra.mxu0 %v1334
  %v1370 = vpop.f32.mrf.mxu0
  %v1371 = vadd.f32 %v1313, %v1370
  %v1372 = vpop.f32.mrf.mxu0
  %v1373 = vadd.f32 %v1313, %v1372
  %1374 = vmatmul.bf16.gmra.mxu0 %v1337
  %v1375 = vpop.f32.mrf.mxu0
  %v1376 = vadd.f32 %v1313, %v1375
  %v1377 = vpop.f32.mrf.mxu0
  %v1378 = vadd.f32 %v1313, %v1377
  %1379 = vmatmul.bf16.gmra.mxu0 %v1340
  %v1380 = vpop.f32.mrf.mxu0
  %v1381 = vadd.f32 %v1313, %v1380
  %v1382 = vpop.f32.mrf.mxu0
  %v1383 = vadd.f32 %v1313, %v1382
  %1384 = vmatmul.bf16.gmra.mxu0 %v1343
  %v1385 = vpop.f32.mrf.mxu0
  %v1386 = vadd.f32 %v1313, %v1385
  %v1387 = vpop.f32.mrf.mxu0
  %v1388 = vadd.f32 %v1313, %v1387
  %1389 = vmatmul.bf16.gmra.mxu0 %v1346
  %v1390 = vpop.f32.mrf.mxu0
  %v1391 = vadd.f32 %v1313, %v1390
  %v1392 = vpop.f32.mrf.mxu0
  %v1393 = vadd.f32 %v1313, %v1392
  %1394 = vmatmul.bf16.gmra.mxu0 %v1349
  %v1395 = vpop.f32.mrf.mxu0
  %v1396 = vadd.f32 %v1313, %v1395
  %v1397 = vpop.f32.mrf.mxu0
  %v1398 = vadd.f32 %v1313, %v1397
  %1399 = vdwg.mxu0
  %v1404 = vunpack.c.l.b16 %v1307
  %v1405 = vunpack.c.l.b16 %v1308
  %v1406 = vunpack.c.l.b16 %v1309
  %v1407 = vunpack.c.l.b16 %v1310
  %v1408 = vpack.c.b16 %v1405, %v1404
  %v1409 = vpack.c.b16 %v1407, %v1406
  %1412 = vmatpush.bf16.msra.mxu0 0
  %1413 = vmatpush.bf16.msra.mxu0 0
  %1414 = vmatpush.bf16.msra.mxu0 0
  %1415 = vmatpush.bf16.msra.mxu0 0
  %1416 = vmatpush.bf16.msra.mxu0 0
  %1417 = vmatpush.bf16.msra.mxu0 0
  %1418 = vmatpush.bf16.msra.mxu0 %v1409
  %1419 = vmatpush.bf16.msra.mxu0 %v1408
  %1420 = vmatmul.bf16.gmra.mxu0 %v396
  %v1421 = vpop.f32.mrf.mxu0
  %v1422 = vadd.f32 0.0, %v1421
  %v1423 = vpop.f32.mrf.mxu0
  %v1424 = vadd.f32 0.0, %v1423
  %1425 = vdwg.mxu0
  %v1426 = vadd.f32 %v1361, %v1422
  %v1427 = vadd.f32 %v1363, %v1424
  %v1428 = vxor.u32 %v1426, 2147483648
  %v1429 = vxor.u32 %v1427, 2147483648
  %v1430 = vmul.f32 %v1428, 1.442695
  %v1431 = vpow.pop %v1430
  %v1432 = vmul.f32 %v1429, 1.442695
  %v1433 = vpow.pop %v1432
  %v1434 = vadd.f32 %v1431, 1.0
  %v1435 = vadd.f32 %v1433, 1.0
  %v1436 = vrcp.pop %v1434
  %v1437 = vmul.f32 %v1434, %v1436
  %v1438 = vsub.f32 1.0, %v1437
  %v1439 = vmul.f32 %v1436, %v1438
  %v1440 = vadd.f32 %v1436, %v1439
  %vm1441 = vweird.f32 %v1434
  %vm1442 = vweird.f32 %v1436
  %vm1443 = vmor %vm1441, %vm1442
  %v1444 = vsel %vm1443, %v1436, %v1440
  %v1445 = vand.u32 2147483647, %v1434
  %vm1446 = vcmp.eq.f32.partialorder %v1445, 8.507059e+37
  %v1447 = vand.u32 %v1434, 2147483648
  %v1448 = vor.u32 1.1754944e-38, %v1447
  %v1449 = vsel %vm1446, %v1448, %v1444
  %v1450 = vmul.f32 1.0, %v1449
  %v1451 = vrcp.pop %v1435
  %v1452 = vmul.f32 %v1435, %v1451
  %v1453 = vsub.f32 1.0, %v1452
  %v1454 = vmul.f32 %v1451, %v1453
  %v1455 = vadd.f32 %v1451, %v1454
  %vm1456 = vweird.f32 %v1435
  %vm1457 = vweird.f32 %v1451
  %vm1458 = vmor %vm1456, %vm1457
  %v1459 = vsel %vm1458, %v1451, %v1455
  %v1460 = vand.u32 2147483647, %v1435
  %vm1461 = vcmp.eq.f32.partialorder %v1460, 8.507059e+37
  %v1462 = vand.u32 %v1435, 2147483648
  %v1463 = vor.u32 1.1754944e-38, %v1462
  %v1464 = vsel %vm1461, %v1463, %v1459
  %v1465 = vmul.f32 1.0, %v1464
  %v1466 = vmul.f32 %v1450, 2.0
  %v1467 = vmul.f32 %v1465, 2.0
  %v1468 = vsub.f32 %v1466, 1.0
  %v1469 = vsub.f32 %v1467, 1.0
  %v1470 = vsel %vm283, %v1468, %v1450
  %v1471 = vsel %vm283, %v1469, %v1465
  %v1472 = vmul.f32 %v1470, 0.0
  %v1473 = vmul.f32 %v1471, 0.0
  %1476 = vrot.lane.b32.xlu0 %v1470, 64
  %v1477 = vpop.permute.xlu0 %1476
  %1478 = vrot.lane.b32.xlu0 %v1471, 64
  %v1479 = vpop.permute.xlu0 %1478
  %v1482 = vmul.f32 %v1470, %v1477
  %v1483 = vmul.f32 %v1471, %v1479
  %1486 = vrot.lane.b32.xlu0 %v1482, 32
  %v1487 = vpop.permute.xlu0 %1486
  %1488 = vrot.lane.b32.xlu0 %v1483, 32
  %v1489 = vpop.permute.xlu0 %1488
  %v1492 = vadd.f32 %v1472, %v1487
  %v1493 = vadd.f32 %v1473, %v1489
  %v1494 = vtanh.pop %v1492
  %v1495 = vtanh.pop %v1493
  %1498 = vrot.lane.b32.xlu0 %v1494, 64
  %v1499 = vpop.permute.xlu0 %1498
  %1500 = vrot.lane.b32.xlu0 %v1495, 64
  %v1501 = vpop.permute.xlu0 %1500
  %v1504 = vmul.f32 %v1470, %v1499
  %v1505 = vmul.f32 %v1471, %v1501
  %v1506 = vpack.c.bf16 %v1505, %v1504
  %1508 = vrot.lane.b32.xlu0 %v1506, 32
  %v1509 = vpop.permute.xlu0 %1508
  %v1511 = vsel %vm394, %v1509, 0
  %1513 = vmatpush.bf16.msra.mxu0 0
  %1514 = vmatpush.bf16.msra.mxu0 0
  %1515 = vmatpush.bf16.msra.mxu0 0
  %1516 = vmatpush.bf16.msra.mxu0 0
  %1517 = vmatpush.bf16.msra.mxu0 0
  %1518 = vmatpush.bf16.msra.mxu0 0
  %1519 = vmatpush.bf16.msra.mxu0 %v1409
  %1520 = vmatpush.bf16.msra.mxu0 %v1408
  %1521 = vmatmul.bf16.gmra.mxu0 %v1511
  %v1522 = vpop.f32.mrf.mxu0
  %v1523 = vadd.f32 0.0, %v1522
  %v1524 = vpop.f32.mrf.mxu0
  %v1525 = vadd.f32 0.0, %v1524
  %1526 = vdwg.mxu0
  %v1527 = vadd.f32 %v1366, %v1523
  %v1528 = vadd.f32 %v1368, %v1525
  %v1529 = vxor.u32 %v1527, 2147483648
  %v1530 = vxor.u32 %v1528, 2147483648
  %v1531 = vmul.f32 %v1529, 1.442695
  %v1532 = vpow.pop %v1531
  %v1533 = vmul.f32 %v1530, 1.442695
  %v1534 = vpow.pop %v1533
  %v1535 = vadd.f32 %v1532, 1.0
  %v1536 = vadd.f32 %v1534, 1.0
  %v1537 = vrcp.pop %v1535
  %v1538 = vmul.f32 %v1535, %v1537
  %v1539 = vsub.f32 1.0, %v1538
  %v1540 = vmul.f32 %v1537, %v1539
  %v1541 = vadd.f32 %v1537, %v1540
  %vm1542 = vweird.f32 %v1535
  %vm1543 = vweird.f32 %v1537
  %vm1544 = vmor %vm1542, %vm1543
  %v1545 = vsel %vm1544, %v1537, %v1541
  %v1546 = vand.u32 2147483647, %v1535
  %vm1547 = vcmp.eq.f32.partialorder %v1546, 8.507059e+37
  %v1548 = vand.u32 %v1535, 2147483648
  %v1549 = vor.u32 1.1754944e-38, %v1548
  %v1550 = vsel %vm1547, %v1549, %v1545
  %v1551 = vmul.f32 1.0, %v1550
  %v1552 = vrcp.pop %v1536
  %v1553 = vmul.f32 %v1536, %v1552
  %v1554 = vsub.f32 1.0, %v1553
  %v1555 = vmul.f32 %v1552, %v1554
  %v1556 = vadd.f32 %v1552, %v1555
  %vm1557 = vweird.f32 %v1536
  %vm1558 = vweird.f32 %v1552
  %vm1559 = vmor %vm1557, %vm1558
  %v1560 = vsel %vm1559, %v1552, %v1556
  %v1561 = vand.u32 2147483647, %v1536
  %vm1562 = vcmp.eq.f32.partialorder %v1561, 8.507059e+37
  %v1563 = vand.u32 %v1536, 2147483648
  %v1564 = vor.u32 1.1754944e-38, %v1563
  %v1565 = vsel %vm1562, %v1564, %v1560
  %v1566 = vmul.f32 1.0, %v1565
  %v1567 = vmul.f32 %v1551, 2.0
  %v1568 = vmul.f32 %v1566, 2.0
  %v1569 = vsub.f32 %v1567, 1.0
  %v1570 = vsub.f32 %v1568, 1.0
  %v1571 = vsel %vm283, %v1569, %v1551
  %v1572 = vsel %vm283, %v1570, %v1566
  %v1573 = vmul.f32 %v1571, %v1492
  %v1574 = vmul.f32 %v1572, %v1493
  %1577 = vrot.lane.b32.xlu0 %v1571, 64
  %v1578 = vpop.permute.xlu0 %1577
  %1579 = vrot.lane.b32.xlu0 %v1572, 64
  %v1580 = vpop.permute.xlu0 %1579
  %v1583 = vmul.f32 %v1571, %v1578
  %v1584 = vmul.f32 %v1572, %v1580
  %1587 = vrot.lane.b32.xlu0 %v1583, 32
  %v1588 = vpop.permute.xlu0 %1587
  %1589 = vrot.lane.b32.xlu0 %v1584, 32
  %v1590 = vpop.permute.xlu0 %1589
  %v1593 = vadd.f32 %v1573, %v1588
  %v1594 = vadd.f32 %v1574, %v1590
  %v1595 = vtanh.pop %v1593
  %v1596 = vtanh.pop %v1594
  %1599 = vrot.lane.b32.xlu0 %v1595, 64
  %v1600 = vpop.permute.xlu0 %1599
  %1601 = vrot.lane.b32.xlu0 %v1596, 64
  %v1602 = vpop.permute.xlu0 %1601
  %v1605 = vmul.f32 %v1571, %v1600
  %v1606 = vmul.f32 %v1572, %v1602
  %v1607 = vpack.c.bf16 %v1606, %v1605
  %1609 = vrot.lane.b32.xlu0 %v1607, 32
  %v1610 = vpop.permute.xlu0 %1609
  %v1612 = vsel %vm394, %v1610, 0
  %1614 = vmatpush.bf16.msra.mxu0 0
  %1615 = vmatpush.bf16.msra.mxu0 0
  %1616 = vmatpush.bf16.msra.mxu0 0
  %1617 = vmatpush.bf16.msra.mxu0 0
  %1618 = vmatpush.bf16.msra.mxu0 0
  %1619 = vmatpush.bf16.msra.mxu0 0
  %1620 = vmatpush.bf16.msra.mxu0 %v1409
  %1621 = vmatpush.bf16.msra.mxu0 %v1408
  %1622 = vmatmul.bf16.gmra.mxu0 %v1612
  %v1623 = vpop.f32.mrf.mxu0
  %v1624 = vadd.f32 0.0, %v1623
  %v1625 = vpop.f32.mrf.mxu0
  %v1626 = vadd.f32 0.0, %v1625
  %1627 = vdwg.mxu0
  %v1628 = vadd.f32 %v1371, %v1624
  %v1629 = vadd.f32 %v1373, %v1626
  %v1630 = vxor.u32 %v1628, 2147483648
  %v1631 = vxor.u32 %v1629, 2147483648
  %v1632 = vmul.f32 %v1630, 1.442695
  %v1633 = vpow.pop %v1632
  %v1634 = vmul.f32 %v1631, 1.442695
  %v1635 = vpow.pop %v1634
  %v1636 = vadd.f32 %v1633, 1.0
  %v1637 = vadd.f32 %v1635, 1.0
  %v1638 = vrcp.pop %v1636
  %v1639 = vmul.f32 %v1636, %v1638
  %v1640 = vsub.f32 1.0, %v1639
  %v1641 = vmul.f32 %v1638, %v1640
  %v1642 = vadd.f32 %v1638, %v1641
  %vm1643 = vweird.f32 %v1636
  %vm1644 = vweird.f32 %v1638
  %vm1645 = vmor %vm1643, %vm1644
  %v1646 = vsel %vm1645, %v1638, %v1642
  %v1647 = vand.u32 2147483647, %v1636
  %vm1648 = vcmp.eq.f32.partialorder %v1647, 8.507059e+37
  %v1649 = vand.u32 %v1636, 2147483648
  %v1650 = vor.u32 1.1754944e-38, %v1649
  %v1651 = vsel %vm1648, %v1650, %v1646
  %v1652 = vmul.f32 1.0, %v1651
  %v1653 = vrcp.pop %v1637
  %v1654 = vmul.f32 %v1637, %v1653
  %v1655 = vsub.f32 1.0, %v1654
  %v1656 = vmul.f32 %v1653, %v1655
  %v1657 = vadd.f32 %v1653, %v1656
  %vm1658 = vweird.f32 %v1637
  %vm1659 = vweird.f32 %v1653
  %vm1660 = vmor %vm1658, %vm1659
  %v1661 = vsel %vm1660, %v1653, %v1657
  %v1662 = vand.u32 2147483647, %v1637
  %vm1663 = vcmp.eq.f32.partialorder %v1662, 8.507059e+37
  %v1664 = vand.u32 %v1637, 2147483648
  %v1665 = vor.u32 1.1754944e-38, %v1664
  %v1666 = vsel %vm1663, %v1665, %v1661
  %v1667 = vmul.f32 1.0, %v1666
  %v1668 = vmul.f32 %v1652, 2.0
  %v1669 = vmul.f32 %v1667, 2.0
  %v1670 = vsub.f32 %v1668, 1.0
  %v1671 = vsub.f32 %v1669, 1.0
  %v1672 = vsel %vm283, %v1670, %v1652
  %v1673 = vsel %vm283, %v1671, %v1667
  %v1674 = vmul.f32 %v1672, %v1593
  %v1675 = vmul.f32 %v1673, %v1594
  %1678 = vrot.lane.b32.xlu0 %v1672, 64
  %v1679 = vpop.permute.xlu0 %1678
  %1680 = vrot.lane.b32.xlu0 %v1673, 64
  %v1681 = vpop.permute.xlu0 %1680
  %v1684 = vmul.f32 %v1672, %v1679
  %v1685 = vmul.f32 %v1673, %v1681
  %1688 = vrot.lane.b32.xlu0 %v1684, 32
  %v1689 = vpop.permute.xlu0 %1688
  %1690 = vrot.lane.b32.xlu0 %v1685, 32
  %v1691 = vpop.permute.xlu0 %1690
  %v1694 = vadd.f32 %v1674, %v1689
  %v1695 = vadd.f32 %v1675, %v1691
  %v1696 = vtanh.pop %v1694
  %v1697 = vtanh.pop %v1695
  %1700 = vrot.lane.b32.xlu0 %v1696, 64
  %v1701 = vpop.permute.xlu0 %1700
  %1702 = vrot.lane.b32.xlu0 %v1697, 64
  %v1703 = vpop.permute.xlu0 %1702
  %v1706 = vmul.f32 %v1672, %v1701
  %v1707 = vmul.f32 %v1673, %v1703
  %v1708 = vpack.c.bf16 %v1707, %v1706
  %1710 = vrot.lane.b32.xlu0 %v1708, 32
  %v1711 = vpop.permute.xlu0 %1710
  %v1713 = vsel %vm394, %v1711, 0
  %1715 = vmatpush.bf16.msra.mxu0 0
  %1716 = vmatpush.bf16.msra.mxu0 0
  %1717 = vmatpush.bf16.msra.mxu0 0
  %1718 = vmatpush.bf16.msra.mxu0 0
  %1719 = vmatpush.bf16.msra.mxu0 0
  %1720 = vmatpush.bf16.msra.mxu0 0
  %1721 = vmatpush.bf16.msra.mxu0 %v1409
  %1722 = vmatpush.bf16.msra.mxu0 %v1408
  %1723 = vmatmul.bf16.gmra.mxu0 %v1713
  %v1724 = vpop.f32.mrf.mxu0
  %v1725 = vadd.f32 0.0, %v1724
  %v1726 = vpop.f32.mrf.mxu0
  %v1727 = vadd.f32 0.0, %v1726
  %1728 = vdwg.mxu0
  %v1729 = vadd.f32 %v1376, %v1725
  %v1730 = vadd.f32 %v1378, %v1727
  %v1731 = vxor.u32 %v1729, 2147483648
  %v1732 = vxor.u32 %v1730, 2147483648
  %v1733 = vmul.f32 %v1731, 1.442695
  %v1734 = vpow.pop %v1733
  %v1735 = vmul.f32 %v1732, 1.442695
  %v1736 = vpow.pop %v1735
  %v1737 = vadd.f32 %v1734, 1.0
  %v1738 = vadd.f32 %v1736, 1.0
  %v1739 = vrcp.pop %v1737
  %v1740 = vmul.f32 %v1737, %v1739
  %v1741 = vsub.f32 1.0, %v1740
  %v1742 = vmul.f32 %v1739, %v1741
  %v1743 = vadd.f32 %v1739, %v1742
  %vm1744 = vweird.f32 %v1737
  %vm1745 = vweird.f32 %v1739
  %vm1746 = vmor %vm1744, %vm1745
  %v1747 = vsel %vm1746, %v1739, %v1743
  %v1748 = vand.u32 2147483647, %v1737
  %vm1749 = vcmp.eq.f32.partialorder %v1748, 8.507059e+37
  %v1750 = vand.u32 %v1737, 2147483648
  %v1751 = vor.u32 1.1754944e-38, %v1750
  %v1752 = vsel %vm1749, %v1751, %v1747
  %v1753 = vmul.f32 1.0, %v1752
  %v1754 = vrcp.pop %v1738
  %v1755 = vmul.f32 %v1738, %v1754
  %v1756 = vsub.f32 1.0, %v1755
  %v1757 = vmul.f32 %v1754, %v1756
  %v1758 = vadd.f32 %v1754, %v1757
  %vm1759 = vweird.f32 %v1738
  %vm1760 = vweird.f32 %v1754
  %vm1761 = vmor %vm1759, %vm1760
  %v1762 = vsel %vm1761, %v1754, %v1758
  %v1763 = vand.u32 2147483647, %v1738
  %vm1764 = vcmp.eq.f32.partialorder %v1763, 8.507059e+37
  %v1765 = vand.u32 %v1738, 2147483648
  %v1766 = vor.u32 1.1754944e-38, %v1765
  %v1767 = vsel %vm1764, %v1766, %v1762
  %v1768 = vmul.f32 1.0, %v1767
  %v1769 = vmul.f32 %v1753, 2.0
  %v1770 = vmul.f32 %v1768, 2.0
  %v1771 = vsub.f32 %v1769, 1.0
  %v1772 = vsub.f32 %v1770, 1.0
  %v1773 = vsel %vm283, %v1771, %v1753
  %v1774 = vsel %vm283, %v1772, %v1768
  %v1775 = vmul.f32 %v1773, %v1694
  %v1776 = vmul.f32 %v1774, %v1695
  %1779 = vrot.lane.b32.xlu0 %v1773, 64
  %v1780 = vpop.permute.xlu0 %1779
  %1781 = vrot.lane.b32.xlu0 %v1774, 64
  %v1782 = vpop.permute.xlu0 %1781
  %v1785 = vmul.f32 %v1773, %v1780
  %v1786 = vmul.f32 %v1774, %v1782
  %1789 = vrot.lane.b32.xlu0 %v1785, 32
  %v1790 = vpop.permute.xlu0 %1789
  %1791 = vrot.lane.b32.xlu0 %v1786, 32
  %v1792 = vpop.permute.xlu0 %1791
  %v1795 = vadd.f32 %v1775, %v1790
  %v1796 = vadd.f32 %v1776, %v1792
  %v1797 = vtanh.pop %v1795
  %v1798 = vtanh.pop %v1796
  %1801 = vrot.lane.b32.xlu0 %v1797, 64
  %v1802 = vpop.permute.xlu0 %1801
  %1803 = vrot.lane.b32.xlu0 %v1798, 64
  %v1804 = vpop.permute.xlu0 %1803
  %v1807 = vmul.f32 %v1773, %v1802
  %v1808 = vmul.f32 %v1774, %v1804
  %v1809 = vpack.c.bf16 %v1808, %v1807
  %1811 = vrot.lane.b32.xlu0 %v1809, 32
  %v1812 = vpop.permute.xlu0 %1811
  %v1814 = vsel %vm394, %v1812, 0
  %1816 = vmatpush.bf16.msra.mxu0 0
  %1817 = vmatpush.bf16.msra.mxu0 0
  %1818 = vmatpush.bf16.msra.mxu0 0
  %1819 = vmatpush.bf16.msra.mxu0 0
  %1820 = vmatpush.bf16.msra.mxu0 0
  %1821 = vmatpush.bf16.msra.mxu0 0
  %1822 = vmatpush.bf16.msra.mxu0 %v1409
  %1823 = vmatpush.bf16.msra.mxu0 %v1408
  %1824 = vmatmul.bf16.gmra.mxu0 %v1814
  %v1825 = vpop.f32.mrf.mxu0
  %v1826 = vadd.f32 0.0, %v1825
  %v1827 = vpop.f32.mrf.mxu0
  %v1828 = vadd.f32 0.0, %v1827
  %1829 = vdwg.mxu0
  %v1830 = vadd.f32 %v1381, %v1826
  %v1831 = vadd.f32 %v1383, %v1828
  %v1832 = vxor.u32 %v1830, 2147483648
  %v1833 = vxor.u32 %v1831, 2147483648
  %v1834 = vmul.f32 %v1832, 1.442695
  %v1835 = vpow.pop %v1834
  %v1836 = vmul.f32 %v1833, 1.442695
  %v1837 = vpow.pop %v1836
  %v1838 = vadd.f32 %v1835, 1.0
  %v1839 = vadd.f32 %v1837, 1.0
  %v1840 = vrcp.pop %v1838
  %v1841 = vmul.f32 %v1838, %v1840
  %v1842 = vsub.f32 1.0, %v1841
  %v1843 = vmul.f32 %v1840, %v1842
  %v1844 = vadd.f32 %v1840, %v1843
  %vm1845 = vweird.f32 %v1838
  %vm1846 = vweird.f32 %v1840
  %vm1847 = vmor %vm1845, %vm1846
  %v1848 = vsel %vm1847, %v1840, %v1844
  %v1849 = vand.u32 2147483647, %v1838
  %vm1850 = vcmp.eq.f32.partialorder %v1849, 8.507059e+37
  %v1851 = vand.u32 %v1838, 2147483648
  %v1852 = vor.u32 1.1754944e-38, %v1851
  %v1853 = vsel %vm1850, %v1852, %v1848
  %v1854 = vmul.f32 1.0, %v1853
  %v1855 = vrcp.pop %v1839
  %v1856 = vmul.f32 %v1839, %v1855
  %v1857 = vsub.f32 1.0, %v1856
  %v1858 = vmul.f32 %v1855, %v1857
  %v1859 = vadd.f32 %v1855, %v1858
  %vm1860 = vweird.f32 %v1839
  %vm1861 = vweird.f32 %v1855
  %vm1862 = vmor %vm1860, %vm1861
  %v1863 = vsel %vm1862, %v1855, %v1859
  %v1864 = vand.u32 2147483647, %v1839
  %vm1865 = vcmp.eq.f32.partialorder %v1864, 8.507059e+37
  %v1866 = vand.u32 %v1839, 2147483648
  %v1867 = vor.u32 1.1754944e-38, %v1866
  %v1868 = vsel %vm1865, %v1867, %v1863
  %v1869 = vmul.f32 1.0, %v1868
  %v1870 = vmul.f32 %v1854, 2.0
  %v1871 = vmul.f32 %v1869, 2.0
  %v1872 = vsub.f32 %v1870, 1.0
  %v1873 = vsub.f32 %v1871, 1.0
  %v1874 = vsel %vm283, %v1872, %v1854
  %v1875 = vsel %vm283, %v1873, %v1869
  %v1876 = vmul.f32 %v1874, %v1795
  %v1877 = vmul.f32 %v1875, %v1796
  %1880 = vrot.lane.b32.xlu0 %v1874, 64
  %v1881 = vpop.permute.xlu0 %1880
  %1882 = vrot.lane.b32.xlu0 %v1875, 64
  %v1883 = vpop.permute.xlu0 %1882
  %v1886 = vmul.f32 %v1874, %v1881
  %v1887 = vmul.f32 %v1875, %v1883
  %1890 = vrot.lane.b32.xlu0 %v1886, 32
  %v1891 = vpop.permute.xlu0 %1890
  %1892 = vrot.lane.b32.xlu0 %v1887, 32
  %v1893 = vpop.permute.xlu0 %1892
  %v1896 = vadd.f32 %v1876, %v1891
  %v1897 = vadd.f32 %v1877, %v1893
  %v1898 = vtanh.pop %v1896
  %v1899 = vtanh.pop %v1897
  %1902 = vrot.lane.b32.xlu0 %v1898, 64
  %v1903 = vpop.permute.xlu0 %1902
  %1904 = vrot.lane.b32.xlu0 %v1899, 64
  %v1905 = vpop.permute.xlu0 %1904
  %v1908 = vmul.f32 %v1874, %v1903
  %v1909 = vmul.f32 %v1875, %v1905
  %v1910 = vpack.c.bf16 %v1909, %v1908
  %1912 = vrot.lane.b32.xlu0 %v1910, 32
  %v1913 = vpop.permute.xlu0 %1912
  %v1915 = vsel %vm394, %v1913, 0
  %1917 = vmatpush.bf16.msra.mxu0 0
  %1918 = vmatpush.bf16.msra.mxu0 0
  %1919 = vmatpush.bf16.msra.mxu0 0
  %1920 = vmatpush.bf16.msra.mxu0 0
  %1921 = vmatpush.bf16.msra.mxu0 0
  %1922 = vmatpush.bf16.msra.mxu0 0
  %1923 = vmatpush.bf16.msra.mxu0 %v1409
  %1924 = vmatpush.bf16.msra.mxu0 %v1408
  %1925 = vmatmul.bf16.gmra.mxu0 %v1915
  %v1926 = vpop.f32.mrf.mxu0
  %v1927 = vadd.f32 0.0, %v1926
  %v1928 = vpop.f32.mrf.mxu0
  %v1929 = vadd.f32 0.0, %v1928
  %1930 = vdwg.mxu0
  %v1931 = vadd.f32 %v1386, %v1927
  %v1932 = vadd.f32 %v1388, %v1929
  %v1933 = vxor.u32 %v1931, 2147483648
  %v1934 = vxor.u32 %v1932, 2147483648
  %v1935 = vmul.f32 %v1933, 1.442695
  %v1936 = vpow.pop %v1935
  %v1937 = vmul.f32 %v1934, 1.442695
  %v1938 = vpow.pop %v1937
  %v1939 = vadd.f32 %v1936, 1.0
  %v1940 = vadd.f32 %v1938, 1.0
  %v1941 = vrcp.pop %v1939
  %v1942 = vmul.f32 %v1939, %v1941
  %v1943 = vsub.f32 1.0, %v1942
  %v1944 = vmul.f32 %v1941, %v1943
  %v1945 = vadd.f32 %v1941, %v1944
  %vm1946 = vweird.f32 %v1939
  %vm1947 = vweird.f32 %v1941
  %vm1948 = vmor %vm1946, %vm1947
  %v1949 = vsel %vm1948, %v1941, %v1945
  %v1950 = vand.u32 2147483647, %v1939
  %vm1951 = vcmp.eq.f32.partialorder %v1950, 8.507059e+37
  %v1952 = vand.u32 %v1939, 2147483648
  %v1953 = vor.u32 1.1754944e-38, %v1952
  %v1954 = vsel %vm1951, %v1953, %v1949
  %v1955 = vmul.f32 1.0, %v1954
  %v1956 = vrcp.pop %v1940
  %v1957 = vmul.f32 %v1940, %v1956
  %v1958 = vsub.f32 1.0, %v1957
  %v1959 = vmul.f32 %v1956, %v1958
  %v1960 = vadd.f32 %v1956, %v1959
  %vm1961 = vweird.f32 %v1940
  %vm1962 = vweird.f32 %v1956
  %vm1963 = vmor %vm1961, %vm1962
  %v1964 = vsel %vm1963, %v1956, %v1960
  %v1965 = vand.u32 2147483647, %v1940
  %vm1966 = vcmp.eq.f32.partialorder %v1965, 8.507059e+37
  %v1967 = vand.u32 %v1940, 2147483648
  %v1968 = vor.u32 1.1754944e-38, %v1967
  %v1969 = vsel %vm1966, %v1968, %v1964
  %v1970 = vmul.f32 1.0, %v1969
  %v1971 = vmul.f32 %v1955, 2.0
  %v1972 = vmul.f32 %v1970, 2.0
  %v1973 = vsub.f32 %v1971, 1.0
  %v1974 = vsub.f32 %v1972, 1.0
  %v1975 = vsel %vm283, %v1973, %v1955
  %v1976 = vsel %vm283, %v1974, %v1970
  %v1977 = vmul.f32 %v1975, %v1896
  %v1978 = vmul.f32 %v1976, %v1897
  %1981 = vrot.lane.b32.xlu0 %v1975, 64
  %v1982 = vpop.permute.xlu0 %1981
  %1983 = vrot.lane.b32.xlu0 %v1976, 64
  %v1984 = vpop.permute.xlu0 %1983
  %v1987 = vmul.f32 %v1975, %v1982
  %v1988 = vmul.f32 %v1976, %v1984
  %1991 = vrot.lane.b32.xlu0 %v1987, 32
  %v1992 = vpop.permute.xlu0 %1991
  %1993 = vrot.lane.b32.xlu0 %v1988, 32
  %v1994 = vpop.permute.xlu0 %1993
  %v1997 = vadd.f32 %v1977, %v1992
  %v1998 = vadd.f32 %v1978, %v1994
  %v1999 = vtanh.pop %v1997
  %v2000 = vtanh.pop %v1998
  %2003 = vrot.lane.b32.xlu0 %v1999, 64
  %v2004 = vpop.permute.xlu0 %2003
  %2005 = vrot.lane.b32.xlu0 %v2000, 64
  %v2006 = vpop.permute.xlu0 %2005
  %v2009 = vmul.f32 %v1975, %v2004
  %v2010 = vmul.f32 %v1976, %v2006
  %v2011 = vpack.c.bf16 %v2010, %v2009
  %2013 = vrot.lane.b32.xlu0 %v2011, 32
  %v2014 = vpop.permute.xlu0 %2013
  %v2016 = vsel %vm394, %v2014, 0
  %2018 = vmatpush.bf16.msra.mxu0 0
  %2019 = vmatpush.bf16.msra.mxu0 0
  %2020 = vmatpush.bf16.msra.mxu0 0
  %2021 = vmatpush.bf16.msra.mxu0 0
  %2022 = vmatpush.bf16.msra.mxu0 0
  %2023 = vmatpush.bf16.msra.mxu0 0
  %2024 = vmatpush.bf16.msra.mxu0 %v1409
  %2025 = vmatpush.bf16.msra.mxu0 %v1408
  %2026 = vmatmul.bf16.gmra.mxu0 %v2016
  %v2027 = vpop.f32.mrf.mxu0
  %v2028 = vadd.f32 0.0, %v2027
  %v2029 = vpop.f32.mrf.mxu0
  %v2030 = vadd.f32 0.0, %v2029
  %2031 = vdwg.mxu0
  %v2032 = vadd.f32 %v1391, %v2028
  %v2033 = vadd.f32 %v1393, %v2030
  %v2034 = vxor.u32 %v2032, 2147483648
  %v2035 = vxor.u32 %v2033, 2147483648
  %v2036 = vmul.f32 %v2034, 1.442695
  %v2037 = vpow.pop %v2036
  %v2038 = vmul.f32 %v2035, 1.442695
  %v2039 = vpow.pop %v2038
  %v2040 = vadd.f32 %v2037, 1.0
  %v2041 = vadd.f32 %v2039, 1.0
  %v2042 = vrcp.pop %v2040
  %v2043 = vmul.f32 %v2040, %v2042
  %v2044 = vsub.f32 1.0, %v2043
  %v2045 = vmul.f32 %v2042, %v2044
  %v2046 = vadd.f32 %v2042, %v2045
  %vm2047 = vweird.f32 %v2040
  %vm2048 = vweird.f32 %v2042
  %vm2049 = vmor %vm2047, %vm2048
  %v2050 = vsel %vm2049, %v2042, %v2046
  %v2051 = vand.u32 2147483647, %v2040
  %vm2052 = vcmp.eq.f32.partialorder %v2051, 8.507059e+37
  %v2053 = vand.u32 %v2040, 2147483648
  %v2054 = vor.u32 1.1754944e-38, %v2053
  %v2055 = vsel %vm2052, %v2054, %v2050
  %v2056 = vmul.f32 1.0, %v2055
  %v2057 = vrcp.pop %v2041
  %v2058 = vmul.f32 %v2041, %v2057
  %v2059 = vsub.f32 1.0, %v2058
  %v2060 = vmul.f32 %v2057, %v2059
  %v2061 = vadd.f32 %v2057, %v2060
  %vm2062 = vweird.f32 %v2041
  %vm2063 = vweird.f32 %v2057
  %vm2064 = vmor %vm2062, %vm2063
  %v2065 = vsel %vm2064, %v2057, %v2061
  %v2066 = vand.u32 2147483647, %v2041
  %vm2067 = vcmp.eq.f32.partialorder %v2066, 8.507059e+37
  %v2068 = vand.u32 %v2041, 2147483648
  %v2069 = vor.u32 1.1754944e-38, %v2068
  %v2070 = vsel %vm2067, %v2069, %v2065
  %v2071 = vmul.f32 1.0, %v2070
  %v2072 = vmul.f32 %v2056, 2.0
  %v2073 = vmul.f32 %v2071, 2.0
  %v2074 = vsub.f32 %v2072, 1.0
  %v2075 = vsub.f32 %v2073, 1.0
  %v2076 = vsel %vm283, %v2074, %v2056
  %v2077 = vsel %vm283, %v2075, %v2071
  %v2078 = vmul.f32 %v2076, %v1997
  %v2079 = vmul.f32 %v2077, %v1998
  %2082 = vrot.lane.b32.xlu0 %v2076, 64
  %v2083 = vpop.permute.xlu0 %2082
  %2084 = vrot.lane.b32.xlu0 %v2077, 64
  %v2085 = vpop.permute.xlu0 %2084
  %v2088 = vmul.f32 %v2076, %v2083
  %v2089 = vmul.f32 %v2077, %v2085
  %2092 = vrot.lane.b32.xlu0 %v2088, 32
  %v2093 = vpop.permute.xlu0 %2092
  %2094 = vrot.lane.b32.xlu0 %v2089, 32
  %v2095 = vpop.permute.xlu0 %2094
  %v2098 = vadd.f32 %v2078, %v2093
  %v2099 = vadd.f32 %v2079, %v2095
  %v2100 = vtanh.pop %v2098
  %v2101 = vtanh.pop %v2099
  %2104 = vrot.lane.b32.xlu0 %v2100, 64
  %v2105 = vpop.permute.xlu0 %2104
  %2106 = vrot.lane.b32.xlu0 %v2101, 64
  %v2107 = vpop.permute.xlu0 %2106
  %v2110 = vmul.f32 %v2076, %v2105
  %v2111 = vmul.f32 %v2077, %v2107
  %v2112 = vpack.c.bf16 %v2111, %v2110
  %2114 = vrot.lane.b32.xlu0 %v2112, 32
  %v2115 = vpop.permute.xlu0 %2114
  %v2117 = vsel %vm394, %v2115, 0
  %2119 = vmatpush.bf16.msra.mxu0 0
  %2120 = vmatpush.bf16.msra.mxu0 0
  %2121 = vmatpush.bf16.msra.mxu0 0
  %2122 = vmatpush.bf16.msra.mxu0 0
  %2123 = vmatpush.bf16.msra.mxu0 0
  %2124 = vmatpush.bf16.msra.mxu0 0
  %2125 = vmatpush.bf16.msra.mxu0 %v1409
  %2126 = vmatpush.bf16.msra.mxu0 %v1408
  %2127 = vmatmul.bf16.gmra.mxu0 %v2117
  %v2128 = vpop.f32.mrf.mxu0
  %v2129 = vadd.f32 0.0, %v2128
  %v2130 = vpop.f32.mrf.mxu0
  %v2131 = vadd.f32 0.0, %v2130
  %2132 = vdwg.mxu0
  %v2133 = vadd.f32 %v1396, %v2129
  %v2134 = vadd.f32 %v1398, %v2131
  %v2135 = vxor.u32 %v2133, 2147483648
  %v2136 = vxor.u32 %v2134, 2147483648
  %v2137 = vmul.f32 %v2135, 1.442695
  %v2138 = vpow.pop %v2137
  %v2139 = vmul.f32 %v2136, 1.442695
  %v2140 = vpow.pop %v2139
  %v2141 = vadd.f32 %v2138, 1.0
  %v2142 = vadd.f32 %v2140, 1.0
  %v2143 = vrcp.pop %v2141
  %v2144 = vmul.f32 %v2141, %v2143
  %v2145 = vsub.f32 1.0, %v2144
  %v2146 = vmul.f32 %v2143, %v2145
  %v2147 = vadd.f32 %v2143, %v2146
  %vm2148 = vweird.f32 %v2141
  %vm2149 = vweird.f32 %v2143
  %vm2150 = vmor %vm2148, %vm2149
  %v2151 = vsel %vm2150, %v2143, %v2147
  %v2152 = vand.u32 2147483647, %v2141
  %vm2153 = vcmp.eq.f32.partialorder %v2152, 8.507059e+37
  %v2154 = vand.u32 %v2141, 2147483648
  %v2155 = vor.u32 1.1754944e-38, %v2154
  %v2156 = vsel %vm2153, %v2155, %v2151
  %v2157 = vmul.f32 1.0, %v2156
  %v2158 = vrcp.pop %v2142
  %v2159 = vmul.f32 %v2142, %v2158
  %v2160 = vsub.f32 1.0, %v2159
  %v2161 = vmul.f32 %v2158, %v2160
  %v2162 = vadd.f32 %v2158, %v2161
  %vm2163 = vweird.f32 %v2142
  %vm2164 = vweird.f32 %v2158
  %vm2165 = vmor %vm2163, %vm2164
  %v2166 = vsel %vm2165, %v2158, %v2162
  %v2167 = vand.u32 2147483647, %v2142
  %vm2168 = vcmp.eq.f32.partialorder %v2167, 8.507059e+37
  %v2169 = vand.u32 %v2142, 2147483648
  %v2170 = vor.u32 1.1754944e-38, %v2169
  %v2171 = vsel %vm2168, %v2170, %v2166
  %v2172 = vmul.f32 1.0, %v2171
  %v2173 = vmul.f32 %v2157, 2.0
  %v2174 = vmul.f32 %v2172, 2.0
  %v2175 = vsub.f32 %v2173, 1.0
  %v2176 = vsub.f32 %v2174, 1.0
  %v2177 = vsel %vm283, %v2175, %v2157
  %v2178 = vsel %vm283, %v2176, %v2172
  %v2179 = vmul.f32 %v2177, %v2098
  %v2180 = vmul.f32 %v2178, %v2099
  %2183 = vrot.lane.b32.xlu0 %v2177, 64
  %v2184 = vpop.permute.xlu0 %2183
  %2185 = vrot.lane.b32.xlu0 %v2178, 64
  %v2186 = vpop.permute.xlu0 %2185
  %v2189 = vmul.f32 %v2177, %v2184
  %v2190 = vmul.f32 %v2178, %v2186
  %2193 = vrot.lane.b32.xlu0 %v2189, 32
  %v2194 = vpop.permute.xlu0 %2193
  %2195 = vrot.lane.b32.xlu0 %v2190, 32
  %v2196 = vpop.permute.xlu0 %2195
  %v2199 = vadd.f32 %v2179, %v2194
  %v2200 = vadd.f32 %v2180, %v2196
  %v2201 = vtanh.pop %v2199
  %v2202 = vtanh.pop %v2200
  %2205 = vrot.lane.b32.xlu0 %v2201, 64
  %v2206 = vpop.permute.xlu0 %2205
  %2207 = vrot.lane.b32.xlu0 %v2202, 64
  %v2208 = vpop.permute.xlu0 %2207
  %v2211 = vmul.f32 %v2177, %v2206
  %v2212 = vmul.f32 %v2178, %v2208
  %v2213 = vpack.c.bf16 %v2212, %v2211
  %v2214 = vld [vmem:[%s8] sm:$0xf]
  %v2215 = vld [vmem:[%s8 + $0x4] sm:$0xf]
  %v2216 = vld [vmem:[%s8 + $0x8] sm:$0xf]
  %v2217 = vld [vmem:[%s8 + $0xc] sm:$0xf]
  %v2218 = vld [vmem:[%s9] sm:$0x1]
  %v2220 = vperm.slane %v2218, 0
  %2223 = vrot.lane.b32.xlu0 %v2213, 32
  %v2224 = vpop.permute.xlu0 %2223
  %v2229 = vunpack.c.l.b16 %v2214
  %v2230 = vunpack.c.l.b16 %v2215
  %v2231 = vunpack.c.l.b16 %v2216
  %v2232 = vunpack.c.l.b16 %v2217
  %v2233 = vpack.c.b16 %v2230, %v2229
  %v2234 = vpack.c.b16 %v2232, %v2231
  %v2238 = vsel %vm394, %v2224, 0
  %2240 = vmatpush.bf16.msra.mxu0 0
  %2241 = vmatpush.bf16.msra.mxu0 0
  %2242 = vmatpush.bf16.msra.mxu0 0
  %2243 = vmatpush.bf16.msra.mxu0 0
  %2244 = vmatpush.bf16.msra.mxu0 0
  %2245 = vmatpush.bf16.msra.mxu0 0
  %2246 = vmatpush.bf16.msra.mxu0 %v2234
  %2247 = vmatpush.bf16.msra.mxu0 %v2233
  %2248 = vmatmul.bf16.gmra.mxu0 %v2238
  %v2249 = vpop.f32.mrf.mxu0
  %v2250 = vadd.f32 %v2220, %v2249
  %v2251 = vpop.f32.mrf.mxu0
  %v2252 = vadd.f32 %v2220, %v2251
  %2253 = vdwg.mxu0
  %vm2254 = vcmp.gt.f32.partialorder %v2250, 0.0
  %vm2255 = vcmp.gt.f32.partialorder %v2252, 0.0
  %v2256 = vmul.f32 %v2250, 0.01
  %v2257 = vmul.f32 %v2252, 0.01
  %v2258 = vsel %vm2254, %v2250, %v2256
  %v2259 = vsel %vm2255, %v2252, %v2257
  %v2260 = vpack.c.bf16 %v2259, %v2258
  %v2261 = vld [vmem:[%s10] sm:$0xf]
  %v2262 = vld [vmem:[%s10 + $0x4] sm:$0xf]
  %v2263 = vld [vmem:[%s11] sm:$0x1]
  %v2265 = vperm.slane %v2263, 0
  %v2269 = vunpack.c.l.b16 %v2261
  %v2270 = vunpack.c.l.b16 %v2262
  %v2271 = vpack.c.b16 %v2270, %v2269
  %v2274 = vsel %vm308, %v2260, 0
  %2276 = vmatpush.bf16.msra.mxu0 0
  %2277 = vmatpush.bf16.msra.mxu0 0
  %2278 = vmatpush.bf16.msra.mxu0 0
  %2279 = vmatpush.bf16.msra.mxu0 0
  %2280 = vmatpush.bf16.msra.mxu0 0
  %2281 = vmatpush.bf16.msra.mxu0 0
  %2282 = vmatpush.bf16.msra.mxu0 0
  %2283 = vmatpush.bf16.msra.mxu0 %v2271
  %2284 = vmatmul.bf16.gmra.mxu0 %v2274
  %v2285 = vpop.f32.mrf.mxu0
  %v2286 = vadd.f32 %v2265, %v2285
  %v2287 = vpop.f32.mrf.mxu0
  %v2288 = vadd.f32 %v2265, %v2287
  %2289 = vdwg.mxu0
  %vm2290 = vcmask 64512
  %2291 = vst.msk [vmem:[%s12] sm:$0xff] %vm2290, %v2286
  %2292 = vst.msk [vmem:[%s12 + $0x8] sm:$0xff] %vm2290, %v2288
  // Predicated region
  $region50: #{lstm_model_forward.1} parent=0 // pred_check
    _
  $region51: #{lstm_model_forward.1} parent=0 // pred_check_branch
    %2294 = sbr.rel (0) target = $region53
  $region52: #{lstm_model_forward.1} parent=0 // pred_region
    _
  $region53: #{lstm_model_forward.1} parent=0 // pred_fallthru
    _
  // Predicated region
  $region54: #{lstm_model_forward.1} parent=0 // pred_check
    _
  $region55: #{lstm_model_forward.1} parent=0 // pred_check_branch
    %2296 = sbr.rel (0) target = $region57
  $region56: #{lstm_model_forward.1} parent=0 // pred_region
    _
  $region57: #{lstm_model_forward.1} parent=0 // pred_fallthru
    _

</llo_original>
